<compile_context>
chip_gen: v5e
topology: v5e:2x2
jax: 0.10.0
libtpu: 0.0.40
codegen_flags: <defaults>
</compile_context>

<pallas_src>
import functools
import math

import jax
import jax.numpy as jnp
from jax.experimental import pallas as pl
from jax.experimental.pallas import tpu as pltpu


def _layer_norm(x, g, b, eps=1e-5):
    mu = jnp.mean(x, axis=-1, keepdims=True)
    var = jnp.mean((x - mu) ** 2, axis=-1, keepdims=True)
    return (x - mu) * jax.lax.rsqrt(var + eps) * g + b


def _encoder_layer_kernel(
    x_q_ref, x_full_ref, kvalid_ref,
    ln1_g_ref, ln1_b_ref,
    wq_ref, bq_ref,              # Q projection, scale pre-folded   (D, D), (1, D)
    wkv_ref, bkv_ref,            # fused K/V projection             (D, 2D), (1, 2D)
    wo_ref, bo_ref,              # output projection                (D, D), (1, D)
    ln2_g_ref, ln2_b_ref,
    w1_ref, b1_ref,              # FFN in   (D, F), (1, F)
    w2_ref, b2_ref,              # FFN out  (F, D), (1, D)
    out_ref,
    kv_scratch,                  # VMEM (N, 2D) bf16, persists across query tiles
    *, num_heads, d_k,
):
    f32 = jnp.float32
    D = num_heads * d_k
    cdt = wq_ref.dtype           # bf16 compute dtype for big matmuls

    # ---- K/V for the WHOLE sequence: compute once per batch element ----------
    @pl.when(pl.program_id(1) == 0)
    def _():
        x_full = x_full_ref[0].astype(f32)                          # (N, D)
        xn_full = _layer_norm(x_full, ln1_g_ref[...], ln1_b_ref[...])
        kv = jnp.dot(xn_full.astype(cdt), wkv_ref[...],
                     preferred_element_type=f32) + bkv_ref[...]     # (N, 2D)
        kv_scratch[...] = kv.astype(cdt)

    # ---- sublayer 0: pre-LN -> multi-head attention -> residual --------------
    x = x_q_ref[0].astype(f32)                                      # (tq, D)
    xn = _layer_norm(x, ln1_g_ref[...], ln1_b_ref[...])
    # 1/sqrt(d_k) already folded into wq/bq at prep time.
    q = (jnp.dot(xn.astype(cdt), wq_ref[...],
                 preferred_element_type=f32) + bq_ref[...]).astype(cdt)   # (tq, D)

    kv = kv_scratch[...]                                            # (N, 2D) bf16
    k = kv[:, :D]
    v = kv[:, D:]

    # Additive mask bias, computed once (NOT per head).
    kvalid = kvalid_ref[0]                                          # (1, N)
    bias = jnp.where(kvalid > 0, f32(0.0), f32(-1e9))               # (1, N)

    heads = []
    for h in range(num_heads):
        lo, hi = h * d_k, (h + 1) * d_k
        qh, kh, vh = q[:, lo:hi], k[:, lo:hi], v[:, lo:hi]          # bf16 operands
        s = jax.lax.dot_general(qh, kh, (((1,), (1,)), ((), ())),
                                preferred_element_type=f32)          # (tq, N) f32
        s = s + bias                                                 # masked_fill
        s = s - jnp.max(s, axis=-1, keepdims=True)
        p = jnp.exp(s)
        p = p * pl.reciprocal(jnp.sum(p, axis=-1, keepdims=True), approx=True)
        heads.append(jnp.dot(p.astype(cdt), vh, preferred_element_type=f32))
    o = jnp.concatenate(heads, axis=-1)                              # (tq, D) f32
    attn = jnp.dot(o.astype(cdt), wo_ref[...],
                   preferred_element_type=f32) + bo_ref[...]
    x = x + attn                                  # dropout == identity (eval mode)

    # ---- sublayer 1: pre-LN -> FFN -> residual --------------------------------
    xn2 = _layer_norm(x, ln2_g_ref[...], ln2_b_ref[...])
    hid = jnp.maximum(
        jnp.dot(xn2.astype(cdt), w1_ref[...],
                preferred_element_type=f32) + b1_ref[...], 0.0)
    ff = jnp.dot(hid.astype(cdt), w2_ref[...],
                 preferred_element_type=f32) + b2_ref[...]
    out_ref[0] = (x + ff).astype(out_ref.dtype)


def prepare_params(params, *, num_heads, compute_dtype=jnp.bfloat16):
    """One-time weight prep: fold 1/sqrt(d_k) into Wq/bq, fuse Wk|Wv, cast to bf16.

    Call once (outside the training/inference loop); the result is what
    encoder_layer_forward consumes.
    """
    D = params["wq"].shape[0]
    d_k = D // num_heads
    scale = 1.0 / math.sqrt(d_k)
    return (
        params["ln1_g"], params["ln1_b"],
        (params["wq"] * scale).astype(compute_dtype), params["bq"] * scale,
        jnp.concatenate([params["wk"], params["wv"]], axis=1).astype(compute_dtype),
        jnp.concatenate([params["bk"], params["bv"]], axis=1),
        params["wo"].astype(compute_dtype), params["bo"],
        params["ln2_g"], params["ln2_b"],
        params["w1"].astype(compute_dtype), params["b1"],
        params["w2"].astype(compute_dtype), params["b2"],
    )


def encoder_layer_forward(x, key_valid, prep_weights, *, num_heads,
                          tq=None, out_dtype=jnp.float32):
    """x: (B, N, D) f32. key_valid: (B, 1, N) f32 (1 = attend, 0 = masked key).

    prep_weights: output of prepare_params. Returns (B, N, D) in out_dtype.
    """
    B, N, D = x.shape
    assert D % num_heads == 0
    d_k = D // num_heads
    if tq is None:
        tq = min(N, 256)           # 256 matches the 256-wide v6e/v7x MXU
    assert N % tq == 0

    def rep(arr):                  # full (untiled) weight block, constant index
        nd = arr.ndim
        return pl.BlockSpec(arr.shape, lambda b, i: (0,) * nd)

    in_specs = [
        pl.BlockSpec((1, tq, D), lambda b, i: (b, i, 0)),   # query tile
        pl.BlockSpec((1, N, D), lambda b, i: (b, 0, 0)),    # full seq (K/V proj)
        pl.BlockSpec((1, 1, N), lambda b, i: (b, 0, 0)),    # compact key-valid
    ] + [rep(w) for w in prep_weights]

    out = pl.pallas_call(
        functools.partial(_encoder_layer_kernel, num_heads=num_heads, d_k=d_k),
        out_shape=jax.ShapeDtypeStruct((B, N, D), out_dtype),
        grid_spec=pltpu.PrefetchScalarGridSpec(
            num_scalar_prefetch=0,
            grid=(B, N // tq),
            in_specs=in_specs,
            out_specs=pl.BlockSpec((1, tq, D), lambda b, i: (b, i, 0)),
            scratch_shapes=[pltpu.VMEM((N, 2 * D), jnp.bfloat16)],
        ),
        compiler_params=pltpu.CompilerParams(
            # batch axis shards across TensorCores; tile axis must stay
            # sequential because the K/V scratch is carried across it.
            dimension_semantics=("parallel", "arbitrary"),
        ),
    )(x, x, key_valid, *prep_weights)
    return out


def init_params(key, d_model, d_ff):
    """Deterministic synthetic parameters (stored transposed vs torch: x @ W + b)."""
    ks = iter(jax.random.split(key, 24))

    def lin(shape, scale=0.1):
        return (scale * jax.random.normal(next(ks), shape)).astype(jnp.float32)

    def bias(dim, scale=0.05):
        return (scale * jax.random.normal(next(ks), (1, dim))).astype(jnp.float32)

    D = d_model
    return {
        "ln1_g": jnp.ones((1, D), jnp.float32), "ln1_b": jnp.zeros((1, D), jnp.float32),
        "wq": lin((D, D)), "bq": bias(D),
        "wk": lin((D, D)), "bk": bias(D),
        "wv": lin((D, D)), "bv": bias(D),
        "wo": lin((D, D)), "bo": bias(D),
        "ln2_g": jnp.ones((1, D), jnp.float32), "ln2_b": jnp.zeros((1, D), jnp.float32),
        "w1": lin((D, d_ff)), "b1": bias(d_ff),
        "w2": lin((d_ff, D)), "b2": bias(D),
    }


def reference_forward(x, key_valid, p, num_heads):
    """Pure-JAX f32 reference of the PyTorch EncoderLayer forward (eval mode)."""
    B, N, D = x.shape
    d_k = D // num_heads

    def ln(h, g, b, eps=1e-5):
        mu = jnp.mean(h, -1, keepdims=True)
        var = jnp.mean((h - mu) ** 2, -1, keepdims=True)
        return (h - mu) / jnp.sqrt(var + eps) * g + b

    def split(t):  # (B, N, D) -> (B, h, N, d_k)
        return t.reshape(B, N, num_heads, d_k).transpose(0, 2, 1, 3)

    xn = ln(x, p["ln1_g"], p["ln1_b"])
    q, k, v = (split(xn @ p["wq"] + p["bq"]),
               split(xn @ p["wk"] + p["bk"]),
               split(xn @ p["wv"] + p["bv"]))
    s = jnp.einsum("bhqd,bhkd->bhqk", q, k) / jnp.sqrt(d_k)
    s = jnp.where(key_valid[:, :, None, :] > 0, s, -1e9)     # (B,1,1,N) broadcast
    a = jax.nn.softmax(s, axis=-1)
    o = jnp.einsum("bhqk,bhkd->bhqd", a, v).transpose(0, 2, 1, 3).reshape(B, N, D)
    x = x + (o @ p["wo"] + p["bo"])

    xn2 = ln(x, p["ln2_g"], p["ln2_b"])
    ff = jax.nn.relu(xn2 @ p["w1"] + p["b1"]) @ p["w2"] + p["b2"]
    return x + ff


if __name__ == "__main__":
    B, N, D = 2, 8, 32          # batch, sequence, d_model
    NUM_HEADS, D_FF = 4, 64

    key = jax.random.PRNGKey(0)
    kx, kp = jax.random.split(key)
    x = jax.random.normal(kx, (B, N, D), dtype=jnp.float32)
    params = init_params(kp, D, D_FF)
    prep = prepare_params(params, num_heads=NUM_HEADS)     # one-time weight prep

    # padding-style attention mask: batch 0 sees all 8 keys, batch 1 only first 5
    lengths = jnp.array([N, 5])
    key_valid = (jnp.arange(N)[None, :] < lengths[:, None]).astype(jnp.float32)   # (B, N)
    key_valid = key_valid[:, None, :]                                             # (B, 1, N)

    out = encoder_layer_forward(x, key_valid, prep, num_heads=NUM_HEADS)
    jax.block_until_ready(out)

    # sanity check against the pure-JAX f32 reference (bf16 MXU operands -> loose tol)
    out_ref = reference_forward(x, key_valid, params, NUM_HEADS)
    assert out.shape == (B, N, D)
    assert jnp.allclose(out, out_ref, atol=5e-2, rtol=5e-2), \
        f"max abs err = {jnp.max(jnp.abs(out - out_ref))}"

    print("KERNEL_OK")
</pallas_src>

<mosaic_0001>
module attributes {stable_mosaic.version = 11 : i64} {
  func.func @_encoder_layer_kernel(%arg0: i32, %arg1: i32, %arg2: memref<1x8x32xf32, #tpu.memory_space<vmem>>, %arg3: memref<1x8x32xf32, #tpu.memory_space<vmem>>, %arg4: memref<1x1x8xf32, #tpu.memory_space<vmem>>, %arg5: memref<1x32xf32, #tpu.memory_space<vmem>>, %arg6: memref<1x32xf32, #tpu.memory_space<vmem>>, %arg7: memref<32x32xbf16, #tpu.memory_space<vmem>>, %arg8: memref<1x32xf32, #tpu.memory_space<vmem>>, %arg9: memref<32x64xbf16, #tpu.memory_space<vmem>>, %arg10: memref<1x64xf32, #tpu.memory_space<vmem>>, %arg11: memref<32x32xbf16, #tpu.memory_space<vmem>>, %arg12: memref<1x32xf32, #tpu.memory_space<vmem>>, %arg13: memref<1x32xf32, #tpu.memory_space<vmem>>, %arg14: memref<1x32xf32, #tpu.memory_space<vmem>>, %arg15: memref<32x64xbf16, #tpu.memory_space<vmem>>, %arg16: memref<1x64xf32, #tpu.memory_space<vmem>>, %arg17: memref<64x32xbf16, #tpu.memory_space<vmem>>, %arg18: memref<1x32xf32, #tpu.memory_space<vmem>>, %arg19: memref<1x8x32xf32, #tpu.memory_space<vmem>>, %arg20: memref<8x64xbf16, #tpu.memory_space<vmem>>) attributes {dimension_semantics = [#tpu.dimension_semantics<parallel>, #tpu.dimension_semantics<arbitrary>], iteration_bounds = array<i64: 2, 1>, scalar_prefetch = 0 : i64, scratch_operands = 1 : i64, tpu.core_type = #tpu.core_type<tc>, window_params = [{transform_indices = @transform_0, window_bounds = array<i64: 1, 8, 32>}, {transform_indices = @transform_1, window_bounds = array<i64: 1, 8, 32>}, {transform_indices = @transform_2, window_bounds = array<i64: 1, 1, 8>}, {pipeline_mode = #tpu.pipeline_mode<synchronous>, transform_indices = @transform_3, window_bounds = array<i64: 1, 32>}, {pipeline_mode = #tpu.pipeline_mode<synchronous>, transform_indices = @transform_4, window_bounds = array<i64: 1, 32>}, {pipeline_mode = #tpu.pipeline_mode<synchronous>, transform_indices = @transform_5, window_bounds = array<i64: 32, 32>}, {pipeline_mode = #tpu.pipeline_mode<synchronous>, transform_indices = @transform_6, window_bounds = array<i64: 1, 32>}, {pipeline_mode = #tpu.pipeline_mode<synchronous>, transform_indices = @transform_7, window_bounds = array<i64: 32, 64>}, {pipeline_mode = #tpu.pipeline_mode<synchronous>, transform_indices = @transform_8, window_bounds = array<i64: 1, 64>}, {pipeline_mode = #tpu.pipeline_mode<synchronous>, transform_indices = @transform_9, window_bounds = array<i64: 32, 32>}, {pipeline_mode = #tpu.pipeline_mode<synchronous>, transform_indices = @transform_10, window_bounds = array<i64: 1, 32>}, {pipeline_mode = #tpu.pipeline_mode<synchronous>, transform_indices = @transform_11, window_bounds = array<i64: 1, 32>}, {pipeline_mode = #tpu.pipeline_mode<synchronous>, transform_indices = @transform_12, window_bounds = array<i64: 1, 32>}, {pipeline_mode = #tpu.pipeline_mode<synchronous>, transform_indices = @transform_13, window_bounds = array<i64: 32, 64>}, {pipeline_mode = #tpu.pipeline_mode<synchronous>, transform_indices = @transform_14, window_bounds = array<i64: 1, 64>}, {pipeline_mode = #tpu.pipeline_mode<synchronous>, transform_indices = @transform_15, window_bounds = array<i64: 64, 32>}, {pipeline_mode = #tpu.pipeline_mode<synchronous>, transform_indices = @transform_16, window_bounds = array<i64: 1, 32>}, {transform_indices = @transform_17, window_bounds = array<i64: 1, 8, 32>}]} {
    %c0_i32 = arith.constant 0 : i32
    %0 = arith.cmpi eq, %arg1, %c0_i32 : i32
    %1 = arith.extui %0 : i1 to i32
    %c0_i32_0 = arith.constant 0 : i32
    %2 = arith.cmpi ne, %1, %c0_i32_0 : i32
    scf.if %2 {
      %c0_68 = arith.constant 0 : index
      %c0_69 = arith.constant 0 : index
      %c0_70 = arith.constant 0 : index
      %168 = vector.load %arg3[%c0_68, %c0_69, %c0_70] : memref<1x8x32xf32, #tpu.memory_space<vmem>>, vector<1x8x32xf32>
      %169 = vector.shape_cast %168 : vector<1x8x32xf32> to vector<8x32xf32>
      %c0_71 = arith.constant 0 : index
      %c0_72 = arith.constant 0 : index
      %170 = vector.load %arg5[%c0_71, %c0_72] : memref<1x32xf32, #tpu.memory_space<vmem>>, vector<1x32xf32>
      %c0_73 = arith.constant 0 : index
      %c0_74 = arith.constant 0 : index
      %171 = vector.load %arg6[%c0_73, %c0_74] : memref<1x32xf32, #tpu.memory_space<vmem>>, vector<1x32xf32>
      %cst_75 = arith.constant dense<0.000000e+00> : vector<8xf32>
      %172 = vector.multi_reduction <add>, %169, %cst_75 [1] : vector<8x32xf32> to vector<8xf32>
      %173 = vector.shape_cast %172 : vector<8xf32> to vector<8x1xf32>
      %cst_76 = arith.constant 3.200000e+01 : f32
      %174 = vector.broadcast %cst_76 : f32 to vector<8x1xf32>
      %175 = arith.divf %173, %174 : vector<8x1xf32>
      %176 = vector.broadcast %175 : vector<8x1xf32> to vector<8x32xf32>
      %177 = arith.subf %169, %176 : vector<8x32xf32>
      %178 = arith.mulf %177, %177 : vector<8x32xf32>
      %cst_77 = arith.constant dense<0.000000e+00> : vector<8xf32>
      %179 = vector.multi_reduction <add>, %178, %cst_77 [1] : vector<8x32xf32> to vector<8xf32>
      %180 = vector.shape_cast %179 : vector<8xf32> to vector<8x1xf32>
      %cst_78 = arith.constant 3.200000e+01 : f32
      %181 = vector.broadcast %cst_78 : f32 to vector<8x1xf32>
      %182 = arith.divf %180, %181 : vector<8x1xf32>
      %183 = vector.broadcast %175 : vector<8x1xf32> to vector<8x32xf32>
      %184 = arith.subf %169, %183 : vector<8x32xf32>
      %cst_79 = arith.constant 9.99999974E-6 : f32
      %185 = vector.broadcast %cst_79 : f32 to vector<8x1xf32>
      %186 = arith.addf %182, %185 : vector<8x1xf32>
      %187 = math.rsqrt %186 : vector<8x1xf32>
      %188 = vector.broadcast %187 : vector<8x1xf32> to vector<8x32xf32>
      %189 = arith.mulf %184, %188 : vector<8x32xf32>
      %190 = vector.broadcast %170 : vector<1x32xf32> to vector<8x32xf32>
      %191 = arith.mulf %189, %190 : vector<8x32xf32>
      %192 = vector.broadcast %171 : vector<1x32xf32> to vector<8x32xf32>
      %193 = arith.addf %191, %192 : vector<8x32xf32>
      %194 = arith.truncf %193 : vector<8x32xf32> to vector<8x32xbf16>
      %c0_80 = arith.constant 0 : index
      %c0_81 = arith.constant 0 : index
      %195 = vector.load %arg9[%c0_80, %c0_81] : memref<32x64xbf16, #tpu.memory_space<vmem>>, vector<32x64xbf16>
      %cst_82 = arith.constant dense<0.000000e+00> : vector<8x64xf32>
      %196 = tpu.matmul %194, %195, %cst_82 {dimension_numbers = #tpu.dot_dimension_numbers<[1], [0], [0], [1], [0, 0, 1, 1], [], []>} : vector<8x32xbf16>, vector<32x64xbf16>, vector<8x64xf32> -> vector<8x64xf32>
      %c0_83 = arith.constant 0 : index
      %c0_84 = arith.constant 0 : index
      %197 = vector.load %arg10[%c0_83, %c0_84] : memref<1x64xf32, #tpu.memory_space<vmem>>, vector<1x64xf32>
      %198 = vector.broadcast %197 : vector<1x64xf32> to vector<8x64xf32>
      %199 = arith.addf %196, %198 : vector<8x64xf32>
      %200 = arith.truncf %199 : vector<8x64xf32> to vector<8x64xbf16>
      %c0_85 = arith.constant 0 : index
      %c0_86 = arith.constant 0 : index
      %201 = vector.load %arg20[%c0_85, %c0_86] : memref<8x64xbf16, #tpu.memory_space<vmem>>, vector<8x64xbf16>
      tpu.vector_store %arg20[%c0_85, %c0_86], %200 {strides = array<i32>} : memref<8x64xbf16, #tpu.memory_space<vmem>>, vector<8x64xbf16>,
    } else {
    }
    %c0 = arith.constant 0 : index
    %c0_1 = arith.constant 0 : index
    %c0_2 = arith.constant 0 : index
    %3 = vector.load %arg2[%c0, %c0_1, %c0_2] : memref<1x8x32xf32, #tpu.memory_space<vmem>>, vector<1x8x32xf32>
    %4 = vector.shape_cast %3 : vector<1x8x32xf32> to vector<8x32xf32>
    %c0_3 = arith.constant 0 : index
    %c0_4 = arith.constant 0 : index
    %5 = vector.load %arg5[%c0_3, %c0_4] : memref<1x32xf32, #tpu.memory_space<vmem>>, vector<1x32xf32>
    %c0_5 = arith.constant 0 : index
    %c0_6 = arith.constant 0 : index
    %6 = vector.load %arg6[%c0_5, %c0_6] : memref<1x32xf32, #tpu.memory_space<vmem>>, vector<1x32xf32>
    %cst = arith.constant dense<0.000000e+00> : vector<8xf32>
    %7 = vector.multi_reduction <add>, %4, %cst [1] : vector<8x32xf32> to vector<8xf32>
    %8 = vector.shape_cast %7 : vector<8xf32> to vector<8x1xf32>
    %cst_7 = arith.constant 3.200000e+01 : f32
    %9 = vector.broadcast %cst_7 : f32 to vector<8x1xf32>
    %10 = arith.divf %8, %9 : vector<8x1xf32>
    %11 = vector.broadcast %10 : vector<8x1xf32> to vector<8x32xf32>
    %12 = arith.subf %4, %11 : vector<8x32xf32>
    %13 = arith.mulf %12, %12 : vector<8x32xf32>
    %cst_8 = arith.constant dense<0.000000e+00> : vector<8xf32>
    %14 = vector.multi_reduction <add>, %13, %cst_8 [1] : vector<8x32xf32> to vector<8xf32>
    %15 = vector.shape_cast %14 : vector<8xf32> to vector<8x1xf32>
    %cst_9 = arith.constant 3.200000e+01 : f32
    %16 = vector.broadcast %cst_9 : f32 to vector<8x1xf32>
    %17 = arith.divf %15, %16 : vector<8x1xf32>
    %18 = vector.broadcast %10 : vector<8x1xf32> to vector<8x32xf32>
    %19 = arith.subf %4, %18 : vector<8x32xf32>
    %cst_10 = arith.constant 9.99999974E-6 : f32
    %20 = vector.broadcast %cst_10 : f32 to vector<8x1xf32>
    %21 = arith.addf %17, %20 : vector<8x1xf32>
    %22 = math.rsqrt %21 : vector<8x1xf32>
    %23 = vector.broadcast %22 : vector<8x1xf32> to vector<8x32xf32>
    %24 = arith.mulf %19, %23 : vector<8x32xf32>
    %25 = vector.broadcast %5 : vector<1x32xf32> to vector<8x32xf32>
    %26 = arith.mulf %24, %25 : vector<8x32xf32>
    %27 = vector.broadcast %6 : vector<1x32xf32> to vector<8x32xf32>
    %28 = arith.addf %26, %27 : vector<8x32xf32>
    %29 = arith.truncf %28 : vector<8x32xf32> to vector<8x32xbf16>
    %c0_11 = arith.constant 0 : index
    %c0_12 = arith.constant 0 : index
    %30 = vector.load %arg7[%c0_11, %c0_12] : memref<32x32xbf16, #tpu.memory_space<vmem>>, vector<32x32xbf16>
    %cst_13 = arith.constant dense<0.000000e+00> : vector<8x32xf32>
    %31 = tpu.matmul %29, %30, %cst_13 {dimension_numbers = #tpu.dot_dimension_numbers<[1], [0], [0], [1], [0, 0, 1, 1], [], []>} : vector<8x32xbf16>, vector<32x32xbf16>, vector<8x32xf32> -> vector<8x32xf32>
    %c0_14 = arith.constant 0 : index
    %c0_15 = arith.constant 0 : index
    %32 = vector.load %arg8[%c0_14, %c0_15] : memref<1x32xf32, #tpu.memory_space<vmem>>, vector<1x32xf32>
    %33 = vector.broadcast %32 : vector<1x32xf32> to vector<8x32xf32>
    %34 = arith.addf %31, %33 : vector<8x32xf32>
    %35 = arith.truncf %34 : vector<8x32xf32> to vector<8x32xbf16>
    %c0_16 = arith.constant 0 : index
    %c0_17 = arith.constant 0 : index
    %36 = vector.load %arg20[%c0_16, %c0_17] : memref<8x64xbf16, #tpu.memory_space<vmem>>, vector<8x64xbf16>
    %37 = vector.extract_strided_slice %36 {offsets = [0, 0], sizes = [8, 32], strides = [1, 1]} : vector<8x64xbf16> to vector<8x32xbf16>
    %38 = vector.extract_strided_slice %36 {offsets = [0, 32], sizes = [8, 32], strides = [1, 1]} : vector<8x64xbf16> to vector<8x32xbf16>
    %c0_18 = arith.constant 0 : index
    %c0_19 = arith.constant 0 : index
    %c0_20 = arith.constant 0 : index
    %39 = vector.load %arg4[%c0_18, %c0_19, %c0_20] : memref<1x1x8xf32, #tpu.memory_space<vmem>>, vector<1x1x8xf32>
    %40 = vector.shape_cast %39 : vector<1x1x8xf32> to vector<1x8xf32>
    %cst_21 = arith.constant 0.000000e+00 : f32
    %41 = vector.broadcast %cst_21 : f32 to vector<1x8xf32>
    %42 = arith.cmpf ogt, %40, %41 : vector<1x8xf32>
    %cst_22 = arith.constant 0.000000e+00 : f32
    %cst_23 = arith.constant -1.000000e+09 : f32
    %43 = vector.broadcast %cst_22 : f32 to vector<1x8xf32>
    %44 = vector.broadcast %cst_23 : f32 to vector<1x8xf32>
    %45 = arith.select %42, %43, %44 : vector<1x8xi1>, vector<1x8xf32>
    %46 = vector.extract_strided_slice %35 {offsets = [0, 0], sizes = [8, 8], strides = [1, 1]} : vector<8x32xbf16> to vector<8x8xbf16>
    %47 = vector.extract_strided_slice %37 {offsets = [0, 0], sizes = [8, 8], strides = [1, 1]} : vector<8x32xbf16> to vector<8x8xbf16>
    %48 = vector.extract_strided_slice %38 {offsets = [0, 0], sizes = [8, 8], strides = [1, 1]} : vector<8x32xbf16> to vector<8x8xbf16>
    %cst_24 = arith.constant dense<0.000000e+00> : vector<8x8xf32>
    %49 = tpu.matmul %46, %47, %cst_24 {dimension_numbers = #tpu.dot_dimension_numbers<[1], [1], [0], [0], [0, 0, 1, 0], [], []>} : vector<8x8xbf16>, vector<8x8xbf16>, vector<8x8xf32> -> vector<8x8xf32>
    %50 = vector.broadcast %45 : vector<1x8xf32> to vector<8x8xf32>
    %51 = arith.addf %49, %50 : vector<8x8xf32>
    %cst_25 = arith.constant dense<0xFF800000> : vector<8xf32>
    %52 = vector.multi_reduction <maximumf>, %51, %cst_25 [1] : vector<8x8xf32> to vector<8xf32>
    %53 = vector.shape_cast %52 : vector<8xf32> to vector<8x1xf32>
    %54 = vector.broadcast %53 : vector<8x1xf32> to vector<8x8xf32>
    %55 = arith.subf %51, %54 : vector<8x8xf32>
    %56 = math.exp %55 : vector<8x8xf32>
    %cst_26 = arith.constant dense<0.000000e+00> : vector<8xf32>
    %57 = vector.multi_reduction <add>, %56, %cst_26 [1] : vector<8x8xf32> to vector<8xf32>
    %58 = vector.shape_cast %57 : vector<8xf32> to vector<8x1xf32>
    %59 = tpu.reciprocal %58 {approx = true} : vector<8x1xf32> -> vector<8x1xf32>
    %60 = vector.broadcast %59 : vector<8x1xf32> to vector<8x8xf32>
    %61 = arith.mulf %56, %60 : vector<8x8xf32>
    %62 = arith.truncf %61 : vector<8x8xf32> to vector<8x8xbf16>
    %cst_27 = arith.constant dense<0.000000e+00> : vector<8x8xf32>
    %63 = tpu.matmul %62, %48, %cst_27 {dimension_numbers = #tpu.dot_dimension_numbers<[1], [0], [0], [1], [0, 0, 1, 1], [], []>} : vector<8x8xbf16>, vector<8x8xbf16>, vector<8x8xf32> -> vector<8x8xf32>
    %64 = vector.extract_strided_slice %35 {offsets = [0, 8], sizes = [8, 8], strides = [1, 1]} : vector<8x32xbf16> to vector<8x8xbf16>
    %65 = vector.extract_strided_slice %37 {offsets = [0, 8], sizes = [8, 8], strides = [1, 1]} : vector<8x32xbf16> to vector<8x8xbf16>
    %66 = vector.extract_strided_slice %38 {offsets = [0, 8], sizes = [8, 8], strides = [1, 1]} : vector<8x32xbf16> to vector<8x8xbf16>
    %cst_28 = arith.constant dense<0.000000e+00> : vector<8x8xf32>
    %67 = tpu.matmul %64, %65, %cst_28 {dimension_numbers = #tpu.dot_dimension_numbers<[1], [1], [0], [0], [0, 0, 1, 0], [], []>} : vector<8x8xbf16>, vector<8x8xbf16>, vector<8x8xf32> -> vector<8x8xf32>
    %68 = vector.broadcast %45 : vector<1x8xf32> to vector<8x8xf32>
    %69 = arith.addf %67, %68 : vector<8x8xf32>
    %cst_29 = arith.constant dense<0xFF800000> : vector<8xf32>
    %70 = vector.multi_reduction <maximumf>, %69, %cst_29 [1] : vector<8x8xf32> to vector<8xf32>
    %71 = vector.shape_cast %70 : vector<8xf32> to vector<8x1xf32>
    %72 = vector.broadcast %71 : vector<8x1xf32> to vector<8x8xf32>
    %73 = arith.subf %69, %72 : vector<8x8xf32>
    %74 = math.exp %73 : vector<8x8xf32>
    %cst_30 = arith.constant dense<0.000000e+00> : vector<8xf32>
    %75 = vector.multi_reduction <add>, %74, %cst_30 [1] : vector<8x8xf32> to vector<8xf32>
    %76 = vector.shape_cast %75 : vector<8xf32> to vector<8x1xf32>
    %77 = tpu.reciprocal %76 {approx = true} : vector<8x1xf32> -> vector<8x1xf32>
    %78 = vector.broadcast %77 : vector<8x1xf32> to vector<8x8xf32>
    %79 = arith.mulf %74, %78 : vector<8x8xf32>
    %80 = arith.truncf %79 : vector<8x8xf32> to vector<8x8xbf16>
    %cst_31 = arith.constant dense<0.000000e+00> : vector<8x8xf32>
    %81 = tpu.matmul %80, %66, %cst_31 {dimension_numbers = #tpu.dot_dimension_numbers<[1], [0], [0], [1], [0, 0, 1, 1], [], []>} : vector<8x8xbf16>, vector<8x8xbf16>, vector<8x8xf32> -> vector<8x8xf32>
    %82 = vector.extract_strided_slice %35 {offsets = [0, 16], sizes = [8, 8], strides = [1, 1]} : vector<8x32xbf16> to vector<8x8xbf16>
    %83 = vector.extract_strided_slice %37 {offsets = [0, 16], sizes = [8, 8], strides = [1, 1]} : vector<8x32xbf16> to vector<8x8xbf16>
    %84 = vector.extract_strided_slice %38 {offsets = [0, 16], sizes = [8, 8], strides = [1, 1]} : vector<8x32xbf16> to vector<8x8xbf16>
    %cst_32 = arith.constant dense<0.000000e+00> : vector<8x8xf32>
    %85 = tpu.matmul %82, %83, %cst_32 {dimension_numbers = #tpu.dot_dimension_numbers<[1], [1], [0], [0], [0, 0, 1, 0], [], []>} : vector<8x8xbf16>, vector<8x8xbf16>, vector<8x8xf32> -> vector<8x8xf32>
    %86 = vector.broadcast %45 : vector<1x8xf32> to vector<8x8xf32>
    %87 = arith.addf %85, %86 : vector<8x8xf32>
    %cst_33 = arith.constant dense<0xFF800000> : vector<8xf32>
    %88 = vector.multi_reduction <maximumf>, %87, %cst_33 [1] : vector<8x8xf32> to vector<8xf32>
    %89 = vector.shape_cast %88 : vector<8xf32> to vector<8x1xf32>
    %90 = vector.broadcast %89 : vector<8x1xf32> to vector<8x8xf32>
    %91 = arith.subf %87, %90 : vector<8x8xf32>
    %92 = math.exp %91 : vector<8x8xf32>
    %cst_34 = arith.constant dense<0.000000e+00> : vector<8xf32>
    %93 = vector.multi_reduction <add>, %92, %cst_34 [1] : vector<8x8xf32> to vector<8xf32>
    %94 = vector.shape_cast %93 : vector<8xf32> to vector<8x1xf32>
    %95 = tpu.reciprocal %94 {approx = true} : vector<8x1xf32> -> vector<8x1xf32>
    %96 = vector.broadcast %95 : vector<8x1xf32> to vector<8x8xf32>
    %97 = arith.mulf %92, %96 : vector<8x8xf32>
    %98 = arith.truncf %97 : vector<8x8xf32> to vector<8x8xbf16>
    %cst_35 = arith.constant dense<0.000000e+00> : vector<8x8xf32>
    %99 = tpu.matmul %98, %84, %cst_35 {dimension_numbers = #tpu.dot_dimension_numbers<[1], [0], [0], [1], [0, 0, 1, 1], [], []>} : vector<8x8xbf16>, vector<8x8xbf16>, vector<8x8xf32> -> vector<8x8xf32>
    %100 = vector.extract_strided_slice %35 {offsets = [0, 24], sizes = [8, 8], strides = [1, 1]} : vector<8x32xbf16> to vector<8x8xbf16>
    %101 = vector.extract_strided_slice %37 {offsets = [0, 24], sizes = [8, 8], strides = [1, 1]} : vector<8x32xbf16> to vector<8x8xbf16>
    %102 = vector.extract_strided_slice %38 {offsets = [0, 24], sizes = [8, 8], strides = [1, 1]} : vector<8x32xbf16> to vector<8x8xbf16>
    %cst_36 = arith.constant dense<0.000000e+00> : vector<8x8xf32>
    %103 = tpu.matmul %100, %101, %cst_36 {dimension_numbers = #tpu.dot_dimension_numbers<[1], [1], [0], [0], [0, 0, 1, 0], [], []>} : vector<8x8xbf16>, vector<8x8xbf16>, vector<8x8xf32> -> vector<8x8xf32>
    %104 = vector.broadcast %45 : vector<1x8xf32> to vector<8x8xf32>
    %105 = arith.addf %103, %104 : vector<8x8xf32>
    %cst_37 = arith.constant dense<0xFF800000> : vector<8xf32>
    %106 = vector.multi_reduction <maximumf>, %105, %cst_37 [1] : vector<8x8xf32> to vector<8xf32>
    %107 = vector.shape_cast %106 : vector<8xf32> to vector<8x1xf32>
    %108 = vector.broadcast %107 : vector<8x1xf32> to vector<8x8xf32>
    %109 = arith.subf %105, %108 : vector<8x8xf32>
    %110 = math.exp %109 : vector<8x8xf32>
    %cst_38 = arith.constant dense<0.000000e+00> : vector<8xf32>
    %111 = vector.multi_reduction <add>, %110, %cst_38 [1] : vector<8x8xf32> to vector<8xf32>
    %112 = vector.shape_cast %111 : vector<8xf32> to vector<8x1xf32>
    %113 = tpu.reciprocal %112 {approx = true} : vector<8x1xf32> -> vector<8x1xf32>
    %114 = vector.broadcast %113 : vector<8x1xf32> to vector<8x8xf32>
    %115 = arith.mulf %110, %114 : vector<8x8xf32>
    %116 = arith.truncf %115 : vector<8x8xf32> to vector<8x8xbf16>
    %cst_39 = arith.constant dense<0.000000e+00> : vector<8x8xf32>
    %117 = tpu.matmul %116, %102, %cst_39 {dimension_numbers = #tpu.dot_dimension_numbers<[1], [0], [0], [1], [0, 0, 1, 1], [], []>} : vector<8x8xbf16>, vector<8x8xbf16>, vector<8x8xf32> -> vector<8x8xf32>
    %118 = tpu.concatenate %63, %81, %99, %117 in 1 : vector<8x8xf32>, vector<8x8xf32>, vector<8x8xf32>, vector<8x8xf32> -> vector<8x32xf32>
    %119 = arith.truncf %118 : vector<8x32xf32> to vector<8x32xbf16>
    %c0_40 = arith.constant 0 : index
    %c0_41 = arith.constant 0 : index
    %120 = vector.load %arg11[%c0_40, %c0_41] : memref<32x32xbf16, #tpu.memory_space<vmem>>, vector<32x32xbf16>
    %cst_42 = arith.constant dense<0.000000e+00> : vector<8x32xf32>
    %121 = tpu.matmul %119, %120, %cst_42 {dimension_numbers = #tpu.dot_dimension_numbers<[1], [0], [0], [1], [0, 0, 1, 1], [], []>} : vector<8x32xbf16>, vector<32x32xbf16>, vector<8x32xf32> -> vector<8x32xf32>
    %c0_43 = arith.constant 0 : index
    %c0_44 = arith.constant 0 : index
    %122 = vector.load %arg12[%c0_43, %c0_44] : memref<1x32xf32, #tpu.memory_space<vmem>>, vector<1x32xf32>
    %123 = vector.broadcast %122 : vector<1x32xf32> to vector<8x32xf32>
    %124 = arith.addf %121, %123 : vector<8x32xf32>
    %125 = arith.addf %4, %124 : vector<8x32xf32>
    %c0_45 = arith.constant 0 : index
    %c0_46 = arith.constant 0 : index
    %126 = vector.load %arg13[%c0_45, %c0_46] : memref<1x32xf32, #tpu.memory_space<vmem>>, vector<1x32xf32>
    %c0_47 = arith.constant 0 : index
    %c0_48 = arith.constant 0 : index
    %127 = vector.load %arg14[%c0_47, %c0_48] : memref<1x32xf32, #tpu.memory_space<vmem>>, vector<1x32xf32>
    %cst_49 = arith.constant dense<0.000000e+00> : vector<8xf32>
    %128 = vector.multi_reduction <add>, %125, %cst_49 [1] : vector<8x32xf32> to vector<8xf32>
    %129 = vector.shape_cast %128 : vector<8xf32> to vector<8x1xf32>
    %cst_50 = arith.constant 3.200000e+01 : f32
    %130 = vector.broadcast %cst_50 : f32 to vector<8x1xf32>
    %131 = arith.divf %129, %130 : vector<8x1xf32>
    %132 = vector.broadcast %131 : vector<8x1xf32> to vector<8x32xf32>
    %133 = arith.subf %125, %132 : vector<8x32xf32>
    %134 = arith.mulf %133, %133 : vector<8x32xf32>
    %cst_51 = arith.constant dense<0.000000e+00> : vector<8xf32>
    %135 = vector.multi_reduction <add>, %134, %cst_51 [1] : vector<8x32xf32> to vector<8xf32>
    %136 = vector.shape_cast %135 : vector<8xf32> to vector<8x1xf32>
    %cst_52 = arith.constant 3.200000e+01 : f32
    %137 = vector.broadcast %cst_52 : f32 to vector<8x1xf32>
    %138 = arith.divf %136, %137 : vector<8x1xf32>
    %139 = vector.broadcast %131 : vector<8x1xf32> to vector<8x32xf32>
    %140 = arith.subf %125, %139 : vector<8x32xf32>
    %cst_53 = arith.constant 9.99999974E-6 : f32
    %141 = vector.broadcast %cst_53 : f32 to vector<8x1xf32>
    %142 = arith.addf %138, %141 : vector<8x1xf32>
    %143 = math.rsqrt %142 : vector<8x1xf32>
    %144 = vector.broadcast %143 : vector<8x1xf32> to vector<8x32xf32>
    %145 = arith.mulf %140, %144 : vector<8x32xf32>
    %146 = vector.broadcast %126 : vector<1x32xf32> to vector<8x32xf32>
    %147 = arith.mulf %145, %146 : vector<8x32xf32>
    %148 = vector.broadcast %127 : vector<1x32xf32> to vector<8x32xf32>
    %149 = arith.addf %147, %148 : vector<8x32xf32>
    %150 = arith.truncf %149 : vector<8x32xf32> to vector<8x32xbf16>
    %c0_54 = arith.constant 0 : index
    %c0_55 = arith.constant 0 : index
    %151 = vector.load %arg15[%c0_54, %c0_55] : memref<32x64xbf16, #tpu.memory_space<vmem>>, vector<32x64xbf16>
    %cst_56 = arith.constant dense<0.000000e+00> : vector<8x64xf32>
    %152 = tpu.matmul %150, %151, %cst_56 {dimension_numbers = #tpu.dot_dimension_numbers<[1], [0], [0], [1], [0, 0, 1, 1], [], []>} : vector<8x32xbf16>, vector<32x64xbf16>, vector<8x64xf32> -> vector<8x64xf32>
    %c0_57 = arith.constant 0 : index
    %c0_58 = arith.constant 0 : index
    %153 = vector.load %arg16[%c0_57, %c0_58] : memref<1x64xf32, #tpu.memory_space<vmem>>, vector<1x64xf32>
    %154 = vector.broadcast %153 : vector<1x64xf32> to vector<8x64xf32>
    %155 = arith.addf %152, %154 : vector<8x64xf32>
    %cst_59 = arith.constant 0.000000e+00 : f32
    %156 = vector.broadcast %cst_59 : f32 to vector<8x64xf32>
    %157 = arith.maximumf %155, %156 : vector<8x64xf32>
    %158 = arith.truncf %157 : vector<8x64xf32> to vector<8x64xbf16>
    %c0_60 = arith.constant 0 : index
    %c0_61 = arith.constant 0 : index
    %159 = vector.load %arg17[%c0_60, %c0_61] : memref<64x32xbf16, #tpu.memory_space<vmem>>, vector<64x32xbf16>
    %cst_62 = arith.constant dense<0.000000e+00> : vector<8x32xf32>
    %160 = tpu.matmul %158, %159, %cst_62 {dimension_numbers = #tpu.dot_dimension_numbers<[1], [0], [0], [1], [0, 0, 1, 1], [], []>} : vector<8x64xbf16>, vector<64x32xbf16>, vector<8x32xf32> -> vector<8x32xf32>
    %c0_63 = arith.constant 0 : index
    %c0_64 = arith.constant 0 : index
    %161 = vector.load %arg18[%c0_63, %c0_64] : memref<1x32xf32, #tpu.memory_space<vmem>>, vector<1x32xf32>
    %162 = vector.broadcast %161 : vector<1x32xf32> to vector<8x32xf32>
    %163 = arith.addf %160, %162 : vector<8x32xf32>
    %164 = arith.addf %125, %163 : vector<8x32xf32>
    %c0_65 = arith.constant 0 : index
    %c0_66 = arith.constant 0 : index
    %c0_67 = arith.constant 0 : index
    %165 = vector.load %arg19[%c0_65, %c0_66, %c0_67] : memref<1x8x32xf32, #tpu.memory_space<vmem>>, vector<1x8x32xf32>
    %166 = vector.shape_cast %165 : vector<1x8x32xf32> to vector<8x32xf32>
    %167 = vector.shape_cast %164 : vector<8x32xf32> to vector<1x8x32xf32>
    tpu.vector_store %arg19[%c0_65, %c0_66, %c0_67], %167 {strides = array<i32>} : memref<1x8x32xf32, #tpu.memory_space<vmem>>, vector<1x8x32xf32>,
    return
  }
  func.func @transform_0(%arg0: i32, %arg1: i32) -> (i32, i32, i32) {
    %c0_i32 = arith.constant 0 : i32
    %c0_i32_0 = arith.constant 0 : i32
    return %arg0, %arg1, %c0_i32 : i32, i32, i32
  }
  func.func @transform_1(%arg0: i32, %arg1: i32) -> (i32, i32, i32) {
    %c0_i32 = arith.constant 0 : i32
    %c0_i32_0 = arith.constant 0 : i32
    %c0_i32_1 = arith.constant 0 : i32
    return %arg0, %c0_i32, %c0_i32_0 : i32, i32, i32
  }
  func.func @transform_2(%arg0: i32, %arg1: i32) -> (i32, i32, i32) {
    %c0_i32 = arith.constant 0 : i32
    %c0_i32_0 = arith.constant 0 : i32
    %c0_i32_1 = arith.constant 0 : i32
    return %arg0, %c0_i32, %c0_i32_0 : i32, i32, i32
  }
  func.func @transform_3(%arg0: i32, %arg1: i32) -> (i32, i32) {
    %c0_i32 = arith.constant 0 : i32
    %c0_i32_0 = arith.constant 0 : i32
    %c0_i32_1 = arith.constant 0 : i32
    return %c0_i32, %c0_i32_0 : i32, i32
  }
  func.func @transform_4(%arg0: i32, %arg1: i32) -> (i32, i32) {
    %c0_i32 = arith.constant 0 : i32
    %c0_i32_0 = arith.constant 0 : i32
    %c0_i32_1 = arith.constant 0 : i32
    return %c0_i32, %c0_i32_0 : i32, i32
  }
  func.func @transform_5(%arg0: i32, %arg1: i32) -> (i32, i32) {
    %c0_i32 = arith.constant 0 : i32
    %c0_i32_0 = arith.constant 0 : i32
    %c0_i32_1 = arith.constant 0 : i32
    return %c0_i32, %c0_i32_0 : i32, i32
  }
  func.func @transform_6(%arg0: i32, %arg1: i32) -> (i32, i32) {
    %c0_i32 = arith.constant 0 : i32
    %c0_i32_0 = arith.constant 0 : i32
    %c0_i32_1 = arith.constant 0 : i32
    return %c0_i32, %c0_i32_0 : i32, i32
  }
  func.func @transform_7(%arg0: i32, %arg1: i32) -> (i32, i32) {
    %c0_i32 = arith.constant 0 : i32
    %c0_i32_0 = arith.constant 0 : i32
    %c0_i32_1 = arith.constant 0 : i32
    return %c0_i32, %c0_i32_0 : i32, i32
  }
  func.func @transform_8(%arg0: i32, %arg1: i32) -> (i32, i32) {
    %c0_i32 = arith.constant 0 : i32
    %c0_i32_0 = arith.constant 0 : i32
    %c0_i32_1 = arith.constant 0 : i32
    return %c0_i32, %c0_i32_0 : i32, i32
  }
  func.func @transform_9(%arg0: i32, %arg1: i32) -> (i32, i32) {
    %c0_i32 = arith.constant 0 : i32
    %c0_i32_0 = arith.constant 0 : i32
    %c0_i32_1 = arith.constant 0 : i32
    return %c0_i32, %c0_i32_0 : i32, i32
  }
  func.func @transform_10(%arg0: i32, %arg1: i32) -> (i32, i32) {
    %c0_i32 = arith.constant 0 : i32
    %c0_i32_0 = arith.constant 0 : i32
    %c0_i32_1 = arith.constant 0 : i32
    return %c0_i32, %c0_i32_0 : i32, i32
  }
  func.func @transform_11(%arg0: i32, %arg1: i32) -> (i32, i32) {
    %c0_i32 = arith.constant 0 : i32
    %c0_i32_0 = arith.constant 0 : i32
    %c0_i32_1 = arith.constant 0 : i32
    return %c0_i32, %c0_i32_0 : i32, i32
  }
  func.func @transform_12(%arg0: i32, %arg1: i32) -> (i32, i32) {
    %c0_i32 = arith.constant 0 : i32
    %c0_i32_0 = arith.constant 0 : i32
    %c0_i32_1 = arith.constant 0 : i32
    return %c0_i32, %c0_i32_0 : i32, i32
  }
  func.func @transform_13(%arg0: i32, %arg1: i32) -> (i32, i32) {
    %c0_i32 = arith.constant 0 : i32
    %c0_i32_0 = arith.constant 0 : i32
    %c0_i32_1 = arith.constant 0 : i32
    return %c0_i32, %c0_i32_0 : i32, i32
  }
  func.func @transform_14(%arg0: i32, %arg1: i32) -> (i32, i32) {
    %c0_i32 = arith.constant 0 : i32
    %c0_i32_0 = arith.constant 0 : i32
    %c0_i32_1 = arith.constant 0 : i32
    return %c0_i32, %c0_i32_0 : i32, i32
  }
  func.func @transform_15(%arg0: i32, %arg1: i32) -> (i32, i32) {
    %c0_i32 = arith.constant 0 : i32
    %c0_i32_0 = arith.constant 0 : i32
    %c0_i32_1 = arith.constant 0 : i32
    return %c0_i32, %c0_i32_0 : i32, i32
  }
  func.func @transform_16(%arg0: i32, %arg1: i32) -> (i32, i32) {
    %c0_i32 = arith.constant 0 : i32
    %c0_i32_0 = arith.constant 0 : i32
    %c0_i32_1 = arith.constant 0 : i32
    return %c0_i32, %c0_i32_0 : i32, i32
  }
  func.func @transform_17(%arg0: i32, %arg1: i32) -> (i32, i32, i32) {
    %c0_i32 = arith.constant 0 : i32
    %c0_i32_0 = arith.constant 0 : i32
    return %arg0, %arg1, %c0_i32 : i32, i32, i32
  }
}

</mosaic_0001>

<llo_original>
// kernel: tpu_custom_call.1
$region0: #{tpu_custom_call.1}
  #allocation0 [shape = 'u32[]', space=smem, size = 0x4, offset = 0x4, fixed_abs, tag = 'smem constant byte address 0x4 - core index']
  #allocation1 [shape = 'u32[72,128]{1,0:T(1,128)}', space=vmem, size = 0x9000, scoped, tag = 'internal scratch']
  #allocation2 [shape = 'bf16[8,64]{1,0:T(8,128)(2,1)}', space=vmem, size = 0x800, scoped, tag = 'scratch operand']
  %s0 = inlined_call_operand.vmem [shape: f32[2,8,32], index: 0, kind: input, shape index: {}]
  %s1 = inlined_call_operand.vmem [shape: f32[2,8,32], index: 1, kind: input, shape index: {}]
  %s2 = inlined_call_operand.hbm [shape: f32[2,1,8], index: 2, kind: input, shape index: {}]
  %s3 = inlined_call_operand.vmem [shape: f32[1,32], index: 3, kind: input, shape index: {}]
  %s4 = inlined_call_operand.vmem [shape: f32[1,32], index: 4, kind: input, shape index: {}]
  %s5 = inlined_call_operand.vmem [shape: bf16[32,32], index: 5, kind: input, shape index: {}]
  %s6 = inlined_call_operand.vmem [shape: f32[1,32], index: 6, kind: input, shape index: {}]
  %s7 = inlined_call_operand.hbm [shape: bf16[32,64], index: 7, kind: input, shape index: {}]
  %s8 = inlined_call_operand.vmem [shape: f32[1,64], index: 8, kind: input, shape index: {}]
  %s9 = inlined_call_operand.hbm [shape: bf16[32,32], index: 9, kind: input, shape index: {}]
  %s10 = inlined_call_operand.vmem [shape: f32[1,32], index: 10, kind: input, shape index: {}]
  %s11 = inlined_call_operand.vmem [shape: f32[1,32], index: 11, kind: input, shape index: {}]
  %s12 = inlined_call_operand.vmem [shape: f32[1,32], index: 12, kind: input, shape index: {}]
  %s13 = inlined_call_operand.hbm [shape: bf16[32,64], index: 13, kind: input, shape index: {}]
  %s14 = inlined_call_operand.vmem [shape: f32[1,64], index: 14, kind: input, shape index: {}]
  %s15 = inlined_call_operand.vmem [shape: bf16[64,32], index: 15, kind: input, shape index: {}]
  %s16 = inlined_call_operand.vmem [shape: f32[1,32], index: 16, kind: input, shape index: {}]
  %s17 = inlined_call_operand.hbm [shape: f32[2,8,32], index: 17, kind: output, shape index: {}]
  %s18 = sld [smem:[#allocation0]]
  $region121: #{tpu_custom_call.1} parent=0
    _
  %s20 = ssub.s32 1, %s18
  %s21 = scalar_select 0, %s20, %s18
  $region1: #{tpu_custom_call.1} parent=0
    #allocation3 [shape = 'u8[1024]{0}', space=vmem, size = 0x400, scoped, tag = 'input window, operand 2']
    #allocation4 [shape = 's32[2]{0}', space=sflag, size = 0x8, scoped, tag = 'scoped memory for tpu_custom_call.1']
    #allocation5 [shape = 's32[2]{0}', space=sflag, size = 0x8, scoped, tag = 'scoped memory for tpu_custom_call.1']
    #allocation6 [shape = 'u8[8192]{0}', space=vmem, size = 0x2000, scoped, tag = 'input window, operand 7, single buffered']
    #allocation7 [shape = 's32[1]{0}', space=sflag, size = 0x4, scoped, tag = 'scoped memory for tpu_custom_call.1']
    #allocation8 [shape = 'u8[8192]{0}', space=vmem, size = 0x2000, scoped, tag = 'input window, operand 9, single buffered']
    #allocation9 [shape = 'u8[8192]{0}', space=vmem, size = 0x2000, scoped, tag = 'input window, operand 13, single buffered']
    #allocation10 [shape = 's32[1]{0}', space=sflag, size = 0x4, scoped, tag = 'scoped memory for tpu_custom_call.1']
    #allocation11 [shape = 'u8[8192]{0}', space=vmem, size = 0x2000, scoped, tag = 'output window, operand 0']
    %22 = vsyncpa [#allocation4], 0
    %s23 = scalar_lea.sflag [#allocation4], 1
    %24 = vsyncpa %s23, 0
    %25 = vsyncpa [#allocation7], 0
    %26 = vsyncpa [#allocation10], 0
    %27 = vsyncpa [#allocation5], 0
    %s28 = scalar_lea.sflag [#allocation5], 1
    %29 = vsyncpa %s28, 0
    loop: start=0, step=1, limit=4
    $region2: #{tpu_custom_call.1} parent=1 // loop_pre_header
      _
    $region3: #{tpu_custom_call.1} parent=1 // loop_header
      %s31 = sphi 0, %s35
      %p32 = scmp.ge.s32.totalorder %s31, 4
      %s38 = sphi 0, %s50
      %s39 = sphi 0, %s46
      %s40 = sphi 0, %s38
      %s41 = sphi 0, %s39
      %s42 = sphi 0, %s40
      %s43 = sphi 0, %s41
      %s55 = sphi 0, %s57
      %s58 = sphi 0, %s55
      %s59 = sphi 0, %s58
      %s75 = sphi 0, %s59
      %s81 = sphi 0, %s83
      %s84 = sphi 0, %s81
      %s85 = sphi 0, %s84
      %s101 = sphi 0, %s85
      %s107 = sphi 0, %s109
      %s110 = sphi 0, %s107
      %s111 = sphi 0, %s110
      %s127 = sphi 0, %s111
      %s131 = sphi 0, %s131
      %s133 = sphi 0, %s131
      %s134 = sphi 0, %s133
      %s148 = sphi 0, %s134
      %s152 = sphi 0, %s152
      %s154 = sphi 0, %s152
      %s155 = sphi 0, %s154
      %s169 = sphi 0, %s155
      %s173 = sphi 0, %s173
      %s175 = sphi 0, %s173
      %s176 = sphi 0, %s175
      %s190 = sphi 0, %s176
      %s194 = sphi 0, %s194
      %s196 = sphi 0, %s194
      %s197 = sphi 0, %s196
      %s211 = sphi 0, %s197
      %s215 = sphi 0, %s215
      %s217 = sphi 0, %s215
      %s218 = sphi 0, %s217
      %s232 = sphi 0, %s218
      %s236 = sphi 0, %s236
      %s238 = sphi 0, %s236
      %s239 = sphi 0, %s238
      %s253 = sphi 0, %s239
      %s257 = sphi 0, %s257
      %s259 = sphi 0, %s257
      %s260 = sphi 0, %s259
      %s274 = sphi 0, %s260
      %s278 = sphi 0, %s278
      %s280 = sphi 0, %s278
      %s281 = sphi 0, %s280
      %s295 = sphi 0, %s281
      %s299 = sphi 0, %s299
      %s301 = sphi 0, %s299
      %s302 = sphi 0, %s301
      %s316 = sphi 0, %s302
      %s320 = sphi 0, %s320
      %s322 = sphi 0, %s320
      %s323 = sphi 0, %s322
      %s337 = sphi 0, %s323
      %s341 = sphi 0, %s341
      %s343 = sphi 0, %s341
      %s344 = sphi 0, %s343
      %s358 = sphi 0, %s344
      %s362 = sphi 0, %s362
      %s364 = sphi 0, %s362
      %s365 = sphi 0, %s364
      %s379 = sphi 0, %s365
      %s383 = sphi 0, %s383
      %s385 = sphi 0, %s383
      %s386 = sphi 0, %s385
      %s400 = sphi 0, %s386
      %s404 = sphi 0, %s404
      %s406 = sphi 0, %s404
      %s407 = sphi 0, %s406
      %s421 = sphi 0, %s407
      %s429 = sphi 0, %s431
      %s432 = sphi 0, %s429
      %s433 = sphi 0, %s432
      %s449 = sphi 0, %s433
    $region4: #{tpu_custom_call.1} parent=1 // loop_header_branch
      %34 = sbr.rel (%p32) target = $region8
    $region5: #{tpu_custom_call.1} parent=1 // loop_body
      %s36 = ssub.s32 %s31, 1
      %s37 = ssub.s32 %s31, 2
      %s44 = sadd.s32 1, %s39
      %p45 = scmp.ge.s32.totalorder %s44, 1
      %s46 = scalar_select %p45, 0, %s44
      %s47 = sadd.s32 1, %s38
      %s48 = scalar_select %p45, %s47, %s38
      %p49 = scmp.ge.s32.totalorder %s48, 2
      %s50 = scalar_select %p49, 0, %s48
      %s51 = ssub.s32 %s38, %s50
      %s52 = ssub.s32 %s39, %s46
      %s53 = sor.u32 %s51, %s52
      %p54 = scmp.eq.s32.totalorder %s53, 0
      %s56 = sadd.s32 %s55, 1
      %s57 = scalar_select %p54, %s55, %s56
      %p60 = pneg %p54
      %p61 = scmp.eq.s32.totalorder %s31, 1
      %p62 = por %p60, %p61
      %p63 = scmp.ne.s32.totalorder %s55, %s58
      %p64 = scmp.eq.s32.totalorder %s31, 0
      %p65 = por %p63, %p64
      %p66 = scmp.ne.s32.totalorder %s55, %s58
      %p67 = scmp.eq.s32.totalorder %s36, 1
      %p68 = por %p66, %p67
      %p69 = scmp.ne.s32.totalorder %s58, %s59
      %p70 = scmp.eq.s32.totalorder %s36, 0
      %p71 = por %p69, %p70
      %p72 = scmp.ne.s32.totalorder %s58, %s59
      %p73 = scmp.eq.s32.totalorder %s37, 1
      %p74 = por %p72, %p73
      %p76 = scmp.ne.s32.totalorder %s59, %s75
      %p77 = scmp.eq.s32.totalorder %s37, 0
      %p78 = por %p76, %p77
      %s79 = ssub.s32 %s38, %s50
      %p80 = scmp.eq.s32.totalorder %s79, 0
      %s82 = sadd.s32 %s81, 1
      %s83 = scalar_select %p80, %s81, %s82
      %p86 = pneg %p80
      %p87 = scmp.eq.s32.totalorder %s31, 1
      %p88 = por %p86, %p87
      %p89 = scmp.ne.s32.totalorder %s81, %s84
      %p90 = scmp.eq.s32.totalorder %s31, 0
      %p91 = por %p89, %p90
      %p92 = scmp.ne.s32.totalorder %s81, %s84
      %p93 = scmp.eq.s32.totalorder %s36, 1
      %p94 = por %p92, %p93
      %p95 = scmp.ne.s32.totalorder %s84, %s85
      %p96 = scmp.eq.s32.totalorder %s36, 0
      %p97 = por %p95, %p96
      %p98 = scmp.ne.s32.totalorder %s84, %s85
      %p99 = scmp.eq.s32.totalorder %s37, 1
      %p100 = por %p98, %p99
      %p102 = scmp.ne.s32.totalorder %s85, %s101
      %p103 = scmp.eq.s32.totalorder %s37, 0
      %p104 = por %p102, %p103
      %s105 = ssub.s32 %s38, %s50
      %p106 = scmp.eq.s32.totalorder %s105, 0
      %s108 = sadd.s32 %s107, 1
      %s109 = scalar_select %p106, %s107, %s108
      %p112 = pneg %p106
      %p113 = scmp.eq.s32.totalorder %s31, 1
      %p114 = por %p112, %p113
      %p115 = scmp.ne.s32.totalorder %s107, %s110
      %p116 = scmp.eq.s32.totalorder %s31, 0
      %p117 = por %p115, %p116
      %p118 = scmp.ne.s32.totalorder %s107, %s110
      %p119 = scmp.eq.s32.totalorder %s36, 1
      %p120 = por %p118, %p119
      %p121 = scmp.ne.s32.totalorder %s110, %s111
      %p122 = scmp.eq.s32.totalorder %s36, 0
      %p123 = por %p121, %p122
      %p124 = scmp.ne.s32.totalorder %s110, %s111
      %p125 = scmp.eq.s32.totalorder %s37, 1
      %p126 = por %p124, %p125
      %p128 = scmp.ne.s32.totalorder %s111, %s127
      %p129 = scmp.eq.s32.totalorder %s37, 0
      %p130 = por %p128, %p129
      %s132 = sadd.s32 %s131, 1
      %p135 = scmp.eq.s32.totalorder %s31, 1
      %p136 = scmp.ne.s32.totalorder %s131, %s133
      %p137 = scmp.eq.s32.totalorder %s31, 0
      %p138 = por %p136, %p137
      %p139 = scmp.ne.s32.totalorder %s131, %s133
      %p140 = scmp.eq.s32.totalorder %s36, 1
      %p141 = por %p139, %p140
      %p142 = scmp.ne.s32.totalorder %s133, %s134
      %p143 = scmp.eq.s32.totalorder %s36, 0
      %p144 = por %p142, %p143
      %p145 = scmp.ne.s32.totalorder %s133, %s134
      %p146 = scmp.eq.s32.totalorder %s37, 1
      %p147 = por %p145, %p146
      %p149 = scmp.ne.s32.totalorder %s134, %s148
      %p150 = scmp.eq.s32.totalorder %s37, 0
      %p151 = por %p149, %p150
      %s153 = sadd.s32 %s152, 1
      %p156 = scmp.eq.s32.totalorder %s31, 1
      %p157 = scmp.ne.s32.totalorder %s152, %s154
      %p158 = scmp.eq.s32.totalorder %s31, 0
      %p159 = por %p157, %p158
      %p160 = scmp.ne.s32.totalorder %s152, %s154
      %p161 = scmp.eq.s32.totalorder %s36, 1
      %p162 = por %p160, %p161
      %p163 = scmp.ne.s32.totalorder %s154, %s155
      %p164 = scmp.eq.s32.totalorder %s36, 0
      %p165 = por %p163, %p164
      %p166 = scmp.ne.s32.totalorder %s154, %s155
      %p167 = scmp.eq.s32.totalorder %s37, 1
      %p168 = por %p166, %p167
      %p170 = scmp.ne.s32.totalorder %s155, %s169
      %p171 = scmp.eq.s32.totalorder %s37, 0
      %p172 = por %p170, %p171
      %s174 = sadd.s32 %s173, 1
      %p177 = scmp.eq.s32.totalorder %s31, 1
      %p178 = scmp.ne.s32.totalorder %s173, %s175
      %p179 = scmp.eq.s32.totalorder %s31, 0
      %p180 = por %p178, %p179
      %p181 = scmp.ne.s32.totalorder %s173, %s175
      %p182 = scmp.eq.s32.totalorder %s36, 1
      %p183 = por %p181, %p182
      %p184 = scmp.ne.s32.totalorder %s175, %s176
      %p185 = scmp.eq.s32.totalorder %s36, 0
      %p186 = por %p184, %p185
      %p187 = scmp.ne.s32.totalorder %s175, %s176
      %p188 = scmp.eq.s32.totalorder %s37, 1
      %p189 = por %p187, %p188
      %p191 = scmp.ne.s32.totalorder %s176, %s190
      %p192 = scmp.eq.s32.totalorder %s37, 0
      %p193 = por %p191, %p192
      %s195 = sadd.s32 %s194, 1
      %p198 = scmp.eq.s32.totalorder %s31, 1
      %p199 = scmp.ne.s32.totalorder %s194, %s196
      %p200 = scmp.eq.s32.totalorder %s31, 0
      %p201 = por %p199, %p200
      %p202 = scmp.ne.s32.totalorder %s194, %s196
      %p203 = scmp.eq.s32.totalorder %s36, 1
      %p204 = por %p202, %p203
      %p205 = scmp.ne.s32.totalorder %s196, %s197
      %p206 = scmp.eq.s32.totalorder %s36, 0
      %p207 = por %p205, %p206
      %p208 = scmp.ne.s32.totalorder %s196, %s197
      %p209 = scmp.eq.s32.totalorder %s37, 1
      %p210 = por %p208, %p209
      %p212 = scmp.ne.s32.totalorder %s197, %s211
      %p213 = scmp.eq.s32.totalorder %s37, 0
      %p214 = por %p212, %p213
      %s216 = sadd.s32 %s215, 1
      %p219 = scmp.eq.s32.totalorder %s31, 1
      %p220 = scmp.ne.s32.totalorder %s215, %s217
      %p221 = scmp.eq.s32.totalorder %s31, 0
      %p222 = por %p220, %p221
      %p223 = scmp.ne.s32.totalorder %s215, %s217
      %p224 = scmp.eq.s32.totalorder %s36, 1
      %p225 = por %p223, %p224
      %p226 = scmp.ne.s32.totalorder %s217, %s218
      %p227 = scmp.eq.s32.totalorder %s36, 0
      %p228 = por %p226, %p227
      %p229 = scmp.ne.s32.totalorder %s217, %s218
      %p230 = scmp.eq.s32.totalorder %s37, 1
      %p231 = por %p229, %p230
      %p233 = scmp.ne.s32.totalorder %s218, %s232
      %p234 = scmp.eq.s32.totalorder %s37, 0
      %p235 = por %p233, %p234
      %s237 = sadd.s32 %s236, 1
      %p240 = scmp.eq.s32.totalorder %s31, 1
      %p241 = scmp.ne.s32.totalorder %s236, %s238
      %p242 = scmp.eq.s32.totalorder %s31, 0
      %p243 = por %p241, %p242
      %p244 = scmp.ne.s32.totalorder %s236, %s238
      %p245 = scmp.eq.s32.totalorder %s36, 1
      %p246 = por %p244, %p245
      %p247 = scmp.ne.s32.totalorder %s238, %s239
      %p248 = scmp.eq.s32.totalorder %s36, 0
      %p249 = por %p247, %p248
      %p250 = scmp.ne.s32.totalorder %s238, %s239
      %p251 = scmp.eq.s32.totalorder %s37, 1
      %p252 = por %p250, %p251
      %p254 = scmp.ne.s32.totalorder %s239, %s253
      %p255 = scmp.eq.s32.totalorder %s37, 0
      %p256 = por %p254, %p255
      %s258 = sadd.s32 %s257, 1
      %p261 = scmp.eq.s32.totalorder %s31, 1
      %p262 = scmp.ne.s32.totalorder %s257, %s259
      %p263 = scmp.eq.s32.totalorder %s31, 0
      %p264 = por %p262, %p263
      %p265 = scmp.ne.s32.totalorder %s257, %s259
      %p266 = scmp.eq.s32.totalorder %s36, 1
      %p267 = por %p265, %p266
      %p268 = scmp.ne.s32.totalorder %s259, %s260
      %p269 = scmp.eq.s32.totalorder %s36, 0
      %p270 = por %p268, %p269
      %p271 = scmp.ne.s32.totalorder %s259, %s260
      %p272 = scmp.eq.s32.totalorder %s37, 1
      %p273 = por %p271, %p272
      %p275 = scmp.ne.s32.totalorder %s260, %s274
      %p276 = scmp.eq.s32.totalorder %s37, 0
      %p277 = por %p275, %p276
      %s279 = sadd.s32 %s278, 1
      %p282 = scmp.eq.s32.totalorder %s31, 1
      %p283 = scmp.ne.s32.totalorder %s278, %s280
      %p284 = scmp.eq.s32.totalorder %s31, 0
      %p285 = por %p283, %p284
      %p286 = scmp.ne.s32.totalorder %s278, %s280
      %p287 = scmp.eq.s32.totalorder %s36, 1
      %p288 = por %p286, %p287
      %p289 = scmp.ne.s32.totalorder %s280, %s281
      %p290 = scmp.eq.s32.totalorder %s36, 0
      %p291 = por %p289, %p290
      %p292 = scmp.ne.s32.totalorder %s280, %s281
      %p293 = scmp.eq.s32.totalorder %s37, 1
      %p294 = por %p292, %p293
      %p296 = scmp.ne.s32.totalorder %s281, %s295
      %p297 = scmp.eq.s32.totalorder %s37, 0
      %p298 = por %p296, %p297
      %s300 = sadd.s32 %s299, 1
      %p303 = scmp.eq.s32.totalorder %s31, 1
      %p304 = scmp.ne.s32.totalorder %s299, %s301
      %p305 = scmp.eq.s32.totalorder %s31, 0
      %p306 = por %p304, %p305
      %p307 = scmp.ne.s32.totalorder %s299, %s301
      %p308 = scmp.eq.s32.totalorder %s36, 1
      %p309 = por %p307, %p308
      %p310 = scmp.ne.s32.totalorder %s301, %s302
      %p311 = scmp.eq.s32.totalorder %s36, 0
      %p312 = por %p310, %p311
      %p313 = scmp.ne.s32.totalorder %s301, %s302
      %p314 = scmp.eq.s32.totalorder %s37, 1
      %p315 = por %p313, %p314
      %p317 = scmp.ne.s32.totalorder %s302, %s316
      %p318 = scmp.eq.s32.totalorder %s37, 0
      %p319 = por %p317, %p318
      %s321 = sadd.s32 %s320, 1
      %p324 = scmp.eq.s32.totalorder %s31, 1
      %p325 = scmp.ne.s32.totalorder %s320, %s322
      %p326 = scmp.eq.s32.totalorder %s31, 0
      %p327 = por %p325, %p326
      %p328 = scmp.ne.s32.totalorder %s320, %s322
      %p329 = scmp.eq.s32.totalorder %s36, 1
      %p330 = por %p328, %p329
      %p331 = scmp.ne.s32.totalorder %s322, %s323
      %p332 = scmp.eq.s32.totalorder %s36, 0
      %p333 = por %p331, %p332
      %p334 = scmp.ne.s32.totalorder %s322, %s323
      %p335 = scmp.eq.s32.totalorder %s37, 1
      %p336 = por %p334, %p335
      %p338 = scmp.ne.s32.totalorder %s323, %s337
      %p339 = scmp.eq.s32.totalorder %s37, 0
      %p340 = por %p338, %p339
      %s342 = sadd.s32 %s341, 1
      %p345 = scmp.eq.s32.totalorder %s31, 1
      %p346 = scmp.ne.s32.totalorder %s341, %s343
      %p347 = scmp.eq.s32.totalorder %s31, 0
      %p348 = por %p346, %p347
      %p349 = scmp.ne.s32.totalorder %s341, %s343
      %p350 = scmp.eq.s32.totalorder %s36, 1
      %p351 = por %p349, %p350
      %p352 = scmp.ne.s32.totalorder %s343, %s344
      %p353 = scmp.eq.s32.totalorder %s36, 0
      %p354 = por %p352, %p353
      %p355 = scmp.ne.s32.totalorder %s343, %s344
      %p356 = scmp.eq.s32.totalorder %s37, 1
      %p357 = por %p355, %p356
      %p359 = scmp.ne.s32.totalorder %s344, %s358
      %p360 = scmp.eq.s32.totalorder %s37, 0
      %p361 = por %p359, %p360
      %s363 = sadd.s32 %s362, 1
      %p366 = scmp.eq.s32.totalorder %s31, 1
      %p367 = scmp.ne.s32.totalorder %s362, %s364
      %p368 = scmp.eq.s32.totalorder %s31, 0
      %p369 = por %p367, %p368
      %p370 = scmp.ne.s32.totalorder %s362, %s364
      %p371 = scmp.eq.s32.totalorder %s36, 1
      %p372 = por %p370, %p371
      %p373 = scmp.ne.s32.totalorder %s364, %s365
      %p374 = scmp.eq.s32.totalorder %s36, 0
      %p375 = por %p373, %p374
      %p376 = scmp.ne.s32.totalorder %s364, %s365
      %p377 = scmp.eq.s32.totalorder %s37, 1
      %p378 = por %p376, %p377
      %p380 = scmp.ne.s32.totalorder %s365, %s379
      %p381 = scmp.eq.s32.totalorder %s37, 0
      %p382 = por %p380, %p381
      %s384 = sadd.s32 %s383, 1
      %p387 = scmp.eq.s32.totalorder %s31, 1
      %p388 = scmp.ne.s32.totalorder %s383, %s385
      %p389 = scmp.eq.s32.totalorder %s31, 0
      %p390 = por %p388, %p389
      %p391 = scmp.ne.s32.totalorder %s383, %s385
      %p392 = scmp.eq.s32.totalorder %s36, 1
      %p393 = por %p391, %p392
      %p394 = scmp.ne.s32.totalorder %s385, %s386
      %p395 = scmp.eq.s32.totalorder %s36, 0
      %p396 = por %p394, %p395
      %p397 = scmp.ne.s32.totalorder %s385, %s386
      %p398 = scmp.eq.s32.totalorder %s37, 1
      %p399 = por %p397, %p398
      %p401 = scmp.ne.s32.totalorder %s386, %s400
      %p402 = scmp.eq.s32.totalorder %s37, 0
      %p403 = por %p401, %p402
      %s405 = sadd.s32 %s404, 1
      %p408 = scmp.eq.s32.totalorder %s31, 1
      %p409 = scmp.ne.s32.totalorder %s404, %s406
      %p410 = scmp.eq.s32.totalorder %s31, 0
      %p411 = por %p409, %p410
      %p412 = scmp.ne.s32.totalorder %s404, %s406
      %p413 = scmp.eq.s32.totalorder %s36, 1
      %p414 = por %p412, %p413
      %p415 = scmp.ne.s32.totalorder %s406, %s407
      %p416 = scmp.eq.s32.totalorder %s36, 0
      %p417 = por %p415, %p416
      %p418 = scmp.ne.s32.totalorder %s406, %s407
      %p419 = scmp.eq.s32.totalorder %s37, 1
      %p420 = por %p418, %p419
      %p422 = scmp.ne.s32.totalorder %s407, %s421
      %p423 = scmp.eq.s32.totalorder %s37, 0
      %p424 = por %p422, %p423
      %s425 = ssub.s32 %s38, %s50
      %s426 = ssub.s32 %s39, %s46
      %s427 = sor.u32 %s425, %s426
      %p428 = scmp.eq.s32.totalorder %s427, 0
      %s430 = sadd.s32 %s429, 1
      %s431 = scalar_select %p428, %s429, %s430
      %p434 = pneg %p428
      %p435 = scmp.eq.s32.totalorder %s31, 1
      %p436 = por %p434, %p435
      %p437 = scmp.ne.s32.totalorder %s429, %s432
      %p438 = scmp.eq.s32.totalorder %s31, 0
      %p439 = por %p437, %p438
      %p440 = scmp.ne.s32.totalorder %s429, %s432
      %p441 = scmp.eq.s32.totalorder %s36, 1
      %p442 = por %p440, %p441
      %p443 = scmp.ne.s32.totalorder %s432, %s433
      %p444 = scmp.eq.s32.totalorder %s36, 0
      %p445 = por %p443, %p444
      %p446 = scmp.ne.s32.totalorder %s432, %s433
      %p447 = scmp.eq.s32.totalorder %s37, 1
      %p448 = por %p446, %p447
      %p450 = scmp.ne.s32.totalorder %s433, %s449
      %p451 = scmp.eq.s32.totalorder %s37, 0
      %p452 = por %p450, %p451
      %p453 = scmp.le.s32.totalorder 1, %s31
      %p454 = scmp.lt.s32.totalorder %s31, 3
      %p455 = pnand %p453, %p454
      %p456 = pneg %p455
      // Predicated region
      $region9: #{tpu_custom_call.1} parent=5 // pred_check
        _
      $region10: #{tpu_custom_call.1} parent=5 // pred_check_branch
        %458 = sbr.rel (%p455) target = $region12
      $region11: #{tpu_custom_call.1} parent=5 // pred_region
        %s459 = ssub.s32 %s31, 1
        // Predicated region
        $region13: #{tpu_custom_call.1} parent=11 // pred_check
          %p460 = pneg %p144
        $region14: #{tpu_custom_call.1} parent=11 // pred_check_branch
          %462 = sbr.rel (%p460) target = $region16
        $region15: #{tpu_custom_call.1} parent=11 // pred_region
          _
        $region16: #{tpu_custom_call.1} parent=11 // pred_fallthru
          _
        // Predicated region
        $region17: #{tpu_custom_call.1} parent=11 // pred_check
          %p463 = pneg %p165
        $region18: #{tpu_custom_call.1} parent=11 // pred_check_branch
          %465 = sbr.rel (%p463) target = $region20
        $region19: #{tpu_custom_call.1} parent=11 // pred_region
          _
        $region20: #{tpu_custom_call.1} parent=11 // pred_fallthru
          _
        // Predicated region
        $region21: #{tpu_custom_call.1} parent=11 // pred_check
          %p466 = pneg %p186
        $region22: #{tpu_custom_call.1} parent=11 // pred_check_branch
          %468 = sbr.rel (%p466) target = $region24
        $region23: #{tpu_custom_call.1} parent=11 // pred_region
          _
        $region24: #{tpu_custom_call.1} parent=11 // pred_fallthru
          _
        // Predicated region
        $region25: #{tpu_custom_call.1} parent=11 // pred_check
          %p469 = pneg %p207
        $region26: #{tpu_custom_call.1} parent=11 // pred_check_branch
          %471 = sbr.rel (%p469) target = $region28
        $region27: #{tpu_custom_call.1} parent=11 // pred_region
          _
        $region28: #{tpu_custom_call.1} parent=11 // pred_fallthru
          _
        // Predicated region
        $region29: #{tpu_custom_call.1} parent=11 // pred_check
          %p472 = pneg %p228
        $region30: #{tpu_custom_call.1} parent=11 // pred_check_branch
          %474 = sbr.rel (%p472) target = $region32
        $region31: #{tpu_custom_call.1} parent=11 // pred_region
          %476 = vsyncadd [#allocation7], 0
          %s477 = sshll.u32 %s7, 4
          %s478 = int_to_ptr.hbm [resolvable:$true] %s477
          %s479 = sshll.u32 [#allocation6], 4
          %s480 = int_to_ptr.vmem [resolvable:$true] %s479
          %485 = dma.hbm_to_vmem [thread:$0]  %s478, 256, %s480, [#allocation7], 64, 64, 4
        $region32: #{tpu_custom_call.1} parent=11 // pred_fallthru
          _
        // Predicated region
        $region33: #{tpu_custom_call.1} parent=11 // pred_check
          %p486 = pneg %p249
        $region34: #{tpu_custom_call.1} parent=11 // pred_check_branch
          %488 = sbr.rel (%p486) target = $region36
        $region35: #{tpu_custom_call.1} parent=11 // pred_region
          _
        $region36: #{tpu_custom_call.1} parent=11 // pred_fallthru
          _
        // Predicated region
        $region37: #{tpu_custom_call.1} parent=11 // pred_check
          %p489 = pneg %p270
        $region38: #{tpu_custom_call.1} parent=11 // pred_check_branch
          %491 = sbr.rel (%p489) target = $region40
        $region39: #{tpu_custom_call.1} parent=11 // pred_region
          %493 = vsyncadd [#allocation7], 0
          %s494 = sshll.u32 %s9, 4
          %s495 = int_to_ptr.hbm [resolvable:$true] %s494
          %s496 = sshll.u32 [#allocation8], 4
          %s497 = int_to_ptr.vmem [resolvable:$true] %s496
          %502 = dma.hbm_to_vmem [thread:$0]  %s495, 256, %s497, [#allocation7], 64, 64, 4
        $region40: #{tpu_custom_call.1} parent=11 // pred_fallthru
          _
        // Predicated region
        $region41: #{tpu_custom_call.1} parent=11 // pred_check
          %p503 = pneg %p291
        $region42: #{tpu_custom_call.1} parent=11 // pred_check_branch
          %505 = sbr.rel (%p503) target = $region44
        $region43: #{tpu_custom_call.1} parent=11 // pred_region
          _
        $region44: #{tpu_custom_call.1} parent=11 // pred_fallthru
          _
        // Predicated region
        $region45: #{tpu_custom_call.1} parent=11 // pred_check
          %p506 = pneg %p312
        $region46: #{tpu_custom_call.1} parent=11 // pred_check_branch
          %508 = sbr.rel (%p506) target = $region48
        $region47: #{tpu_custom_call.1} parent=11 // pred_region
          _
        $region48: #{tpu_custom_call.1} parent=11 // pred_fallthru
          _
        // Predicated region
        $region49: #{tpu_custom_call.1} parent=11 // pred_check
          %p509 = pneg %p333
        $region50: #{tpu_custom_call.1} parent=11 // pred_check_branch
          %511 = sbr.rel (%p509) target = $region52
        $region51: #{tpu_custom_call.1} parent=11 // pred_region
          _
        $region52: #{tpu_custom_call.1} parent=11 // pred_fallthru
          _
        // Predicated region
        $region53: #{tpu_custom_call.1} parent=11 // pred_check
          %p512 = pneg %p354
        $region54: #{tpu_custom_call.1} parent=11 // pred_check_branch
          %514 = sbr.rel (%p512) target = $region56
        $region55: #{tpu_custom_call.1} parent=11 // pred_region
          %516 = vsyncadd [#allocation10], 0
          %s517 = sshll.u32 %s13, 4
          %s518 = int_to_ptr.hbm [resolvable:$true] %s517
          %s519 = sshll.u32 [#allocation9], 4
          %s520 = int_to_ptr.vmem [resolvable:$true] %s519
          %525 = dma.hbm_to_vmem [thread:$0]  %s518, 256, %s520, [#allocation10], 64, 64, 4
        $region56: #{tpu_custom_call.1} parent=11 // pred_fallthru
          _
        // Predicated region
        $region57: #{tpu_custom_call.1} parent=11 // pred_check
          %p526 = pneg %p375
        $region58: #{tpu_custom_call.1} parent=11 // pred_check_branch
          %528 = sbr.rel (%p526) target = $region60
        $region59: #{tpu_custom_call.1} parent=11 // pred_region
          _
        $region60: #{tpu_custom_call.1} parent=11 // pred_fallthru
          _
        // Predicated region
        $region61: #{tpu_custom_call.1} parent=11 // pred_check
          %p529 = pneg %p396
        $region62: #{tpu_custom_call.1} parent=11 // pred_check_branch
          %531 = sbr.rel (%p529) target = $region64
        $region63: #{tpu_custom_call.1} parent=11 // pred_region
          _
        $region64: #{tpu_custom_call.1} parent=11 // pred_fallthru
          _
        // Predicated region
        $region65: #{tpu_custom_call.1} parent=11 // pred_check
          %p532 = pneg %p417
        $region66: #{tpu_custom_call.1} parent=11 // pred_check_branch
          %534 = sbr.rel (%p532) target = $region68
        $region67: #{tpu_custom_call.1} parent=11 // pred_region
          _
        $region68: #{tpu_custom_call.1} parent=11 // pred_fallthru
          _
      $region12: #{tpu_custom_call.1} parent=5 // pred_fallthru
        _
      %p535 = scmp.lt.s32.totalorder %s31, 2
      // Predicated region
      $region69: #{tpu_custom_call.1} parent=5 // pred_check
        %p536 = pneg %p535
      $region70: #{tpu_custom_call.1} parent=5 // pred_check_branch
        %538 = sbr.rel (%p536) target = $region72
      $region71: #{tpu_custom_call.1} parent=5 // pred_region
        // Predicated region
        $region73: #{tpu_custom_call.1} parent=71 // pred_check
          %p539 = pneg %p65
        $region74: #{tpu_custom_call.1} parent=71 // pred_check_branch
          %541 = sbr.rel (%p539) target = $region76
        $region75: #{tpu_custom_call.1} parent=71 // pred_region
          %p542 = scmp.lt.s32.totalorder %s38, 1
          %s543 = scalar_select %p542, %s38, 1
          %p544 = scmp.lt.s32.totalorder %s39, 0
          %s545 = scalar_select %p544, %s39, 0
          %s546 = sadd.s32 %s545, %s543
          %s547 = smul.addr %s546, 8
          %s548 = scalar_lea.vmem %s0, %s547
        $region76: #{tpu_custom_call.1} parent=71 // pred_fallthru
          _
        // Predicated region
        $region77: #{tpu_custom_call.1} parent=71 // pred_check
          %p549 = pneg %p91
        $region78: #{tpu_custom_call.1} parent=71 // pred_check_branch
          %551 = sbr.rel (%p549) target = $region80
        $region79: #{tpu_custom_call.1} parent=71 // pred_region
          %p552 = scmp.lt.s32.totalorder %s38, 1
          %s553 = scalar_select %p552, %s38, 1
          %s554 = smul.addr %s553, 8
          %s555 = scalar_lea.vmem %s1, %s554
        $region80: #{tpu_custom_call.1} parent=71 // pred_fallthru
          _
        // Predicated region
        $region81: #{tpu_custom_call.1} parent=71 // pred_check
          %p556 = pneg %p117
        $region82: #{tpu_custom_call.1} parent=71 // pred_check_branch
          %558 = sbr.rel (%p556) target = $region84
        $region83: #{tpu_custom_call.1} parent=71 // pred_region
          %s559 = sand.u32 %s107, 1
          %s560 = scalar_lea.sflag [#allocation4], %s559
          %s561 = sand.u32 %s107, 1
          %s562 = scalar_lea.vmem [#allocation3], %s561
          %564 = vsyncadd %s560, 0
          %s565 = scalar_lea.hbm %s2, %s38
          %s567 = sshll.u32 %s565, 4
          %s568 = int_to_ptr.hbm [resolvable:$true] %s567
          %s569 = sshll.u32 %s562, 4
          %s570 = int_to_ptr.vmem [resolvable:$true] %s569
          %572 = dma.hbm_to_vmem [thread:$0]  %s568, 16, %s570, %s560
        $region84: #{tpu_custom_call.1} parent=71 // pred_fallthru
          _
      $region72: #{tpu_custom_call.1} parent=5 // pred_fallthru
        _
      %p573 = scmp.le.s32.totalorder 1, %s31
      %p574 = scmp.lt.s32.totalorder %s31, 3
      %p575 = pnand %p573, %p574
      %p576 = pneg %p575
      // Predicated region
      $region85: #{tpu_custom_call.1} parent=5 // pred_check
        _
      $region86: #{tpu_custom_call.1} parent=5 // pred_check_branch
        %578 = sbr.rel (%p575) target = $region88
      $region87: #{tpu_custom_call.1} parent=5 // pred_region
        %s579 = ssub.s32 %s31, 1
        %s580 = sand.u32 %s110, 1
        %s581 = scalar_lea.sflag [#allocation4], %s580
        %s582 = sand.u32 %s110, 1
        %s583 = scalar_lea.vmem [#allocation3], %s582
        // Predicated region
        $region89: #{tpu_custom_call.1} parent=87 // pred_check
          %p584 = pneg %p123
        $region90: #{tpu_custom_call.1} parent=87 // pred_check_branch
          %586 = sbr.rel (%p584) target = $region92
        $region91: #{tpu_custom_call.1} parent=87 // pred_region
          %588 = dma.done %s581, 16
        $region92: #{tpu_custom_call.1} parent=87 // pred_fallthru
          _
        // Predicated region
        $region93: #{tpu_custom_call.1} parent=87 // pred_check
          %p589 = pneg %p228
        $region94: #{tpu_custom_call.1} parent=87 // pred_check_branch
          %591 = sbr.rel (%p589) target = $region96
        $region95: #{tpu_custom_call.1} parent=87 // pred_region
          %593 = dma.done [#allocation7], 256
        $region96: #{tpu_custom_call.1} parent=87 // pred_fallthru
          _
        // Predicated region
        $region97: #{tpu_custom_call.1} parent=87 // pred_check
          %p594 = pneg %p270
        $region98: #{tpu_custom_call.1} parent=87 // pred_check_branch
          %596 = sbr.rel (%p594) target = $region100
        $region99: #{tpu_custom_call.1} parent=87 // pred_region
          %598 = dma.done [#allocation7], 256
        $region100: #{tpu_custom_call.1} parent=87 // pred_fallthru
          _
        // Predicated region
        $region101: #{tpu_custom_call.1} parent=87 // pred_check
          %p599 = pneg %p354
        $region102: #{tpu_custom_call.1} parent=87 // pred_check_branch
          %601 = sbr.rel (%p599) target = $region104
        $region103: #{tpu_custom_call.1} parent=87 // pred_region
          %603 = dma.done [#allocation10], 256
        $region104: #{tpu_custom_call.1} parent=87 // pred_fallthru
          _
        %p604 = scmp.lt.s32.totalorder %s40, 1
        %s605 = scalar_select %p604, %s40, 1
        %p606 = scmp.lt.s32.totalorder %s41, 0
        %s607 = scalar_select %p606, %s41, 0
        %s608 = sadd.s32 %s607, %s605
        %s609 = smul.addr %s608, 8
        %s610 = scalar_lea.vmem %s0, %s609
        %p611 = pneg %p71
        %p612 = pneg %p68
        %p613 = scmp.lt.s32.totalorder %s40, 1
        %s614 = scalar_select %p613, %s40, 1
        %s615 = smul.addr %s614, 8
        %s616 = scalar_lea.vmem %s1, %s615
        %p617 = pneg %p97
        %p618 = pneg %p94
        %s619 = sand.u32 %s110, 1
        %s620 = scalar_lea.sflag [#allocation4], %s619
        %s621 = sand.u32 %s110, 1
        %s622 = scalar_lea.vmem [#allocation3], %s621
        %p623 = pneg %p123
        %p624 = pneg %p120
        %p625 = pneg %p144
        %p626 = pneg %p141
        %p627 = pneg %p165
        %p628 = pneg %p162
        %p629 = pneg %p186
        %p630 = pneg %p183
        %p631 = pneg %p207
        %p632 = pneg %p204
        %p633 = pneg %p228
        %p634 = pneg %p225
        %p635 = pneg %p249
        %p636 = pneg %p246
        %p637 = pneg %p270
        %p638 = pneg %p267
        %p639 = pneg %p291
        %p640 = pneg %p288
        %p641 = pneg %p312
        %p642 = pneg %p309
        %p643 = pneg %p333
        %p644 = pneg %p330
        %p645 = pneg %p354
        %p646 = pneg %p351
        %p647 = pneg %p375
        %p648 = pneg %p372
        %p649 = pneg %p396
        %p650 = pneg %p393
        %p651 = pneg %p417
        %p652 = pneg %p414
        %p653 = pneg %p445
        %p654 = pneg %p442
        %s655 = sand.u32 %s432, 1
        %s656 = scalar_lea.sflag [#allocation5], %s655
        %s657 = sand.u32 %s432, 1
        %s658 = smul.addr %s657, 8
        %s659 = scalar_lea.vmem [#allocation11], %s658
        %p660 = scmp.lt.s32.totalorder %s40, 1
        %s661 = scalar_select %p660, %s40, 1
        %p662 = scmp.lt.s32.totalorder %s41, 0
        %s663 = scalar_select %p662, %s41, 0
        %s664 = sadd.s32 %s663, %s661
        %s665 = smul.addr %s664, 8
        %s666 = scalar_lea.vmem %s0, %s665
        %p667 = scmp.lt.s32.totalorder %s40, 1
        %s668 = scalar_select %p667, %s40, 1
        %s669 = smul.addr %s668, 8
        %s670 = scalar_lea.vmem %s1, %s669
        %p672 = scmp.eq.s32.totalorder %s41, 0
        // Predicated region
        $region105: #{tpu_custom_call.1} parent=87 // pred_check
          %p673 = pneg %p672
        $region106: #{tpu_custom_call.1} parent=87 // pred_check_branch
          %675 = sbr.rel (%p673) target = $region108
        $region107: #{tpu_custom_call.1} parent=87 // pred_region
          %v676 = vld [vmem:[%s670] sm:$0xff]
          %v677 = vld [vmem:[%s3] sm:$0x1]
          %v678 = vld [vmem:[%s4] sm:$0x1]
          %vm679 = vcmask 261120
          %v680 = vsel %vm679, %v676, 0.0
          %681 = vadd.xlane.f32.xlu0 %v680
          %v682 = vpop.xlane.xlu0 %681
          %v683 = vrcp.pop 32.0
          %v684 = vmul.f32 32.0, %v683
          %v685 = vsub.f32 1.0, %v684
          %v686 = vmul.f32 %v683, %v685
          %v687 = vadd.f32 %v683, %v686
          %vm688 = vweird.f32 %v683
          %v689 = vsel %vm688, %v683, %v687
          %v690 = vmul.f32 %v682, %v689
          %v691 = vsub.f32 %v676, %v690
          %v692 = vmul.f32 %v691, %v691
          %v693 = vsel %vm679, %v692, 0.0
          %694 = vadd.xlane.f32.xlu0 %v693
          %v695 = vpop.xlane.xlu0 %694
          %v696 = vmul.f32 %v695, %v689
          %v697 = vadd.f32 %v696, 1e-05
          %v698 = vrsqrt.pop %v697
          %v699 = vmul.f32 %v698, %v697
          %v700 = vmul.f32 %v699, %v698
          %v701 = vmul.f32 0.5, %v700
          %v702 = vsub.f32 1.5, %v701
          %v703 = vmul.f32 %v698, %v702
          %vm704 = vweird.f32 %v697
          %vm705 = vweird.f32 %v698
          %vm706 = vmor %vm704, %vm705
          %v707 = vsel %vm706, %v698, %v703
          %v708 = vmul.f32 %v691, %v707
          %v710 = vperm.slane %v677, 0
          %v712 = vmul.f32 %v708, %v710
          %v714 = vperm.slane %v678, 0
          %v716 = vadd.f32 %v712, %v714
          %v717 = vpack.c.bf16 %v716, %v716
          %v718 = vld [vmem:[#allocation6] sm:$0xf]
          %v719 = vld [vmem:[#allocation6 + $0x4] sm:$0xf]
          %v720 = vld [vmem:[#allocation6 + $0x8] sm:$0xf]
          %v721 = vld [vmem:[#allocation6 + $0xc] sm:$0xf]
          %v722 = vld [vmem:[%s8] sm:$0x1]
          %v724 = vperm.slane %v722, 0
          %v730 = vunpack.c.l.b16 %v718
          %v731 = vunpack.c.l.b16 %v719
          %v732 = vunpack.c.l.b16 %v720
          %v733 = vunpack.c.l.b16 %v721
          %v734 = vpack.c.b16 %v731, %v730
          %v735 = vpack.c.b16 %v733, %v732
          %v739 = vsel %vm679, %v717, 0
          %741 = vmatpush.bf16.msra.mxu0 0
          %742 = vmatpush.bf16.msra.mxu0 0
          %743 = vmatpush.bf16.msra.mxu0 0
          %744 = vmatpush.bf16.msra.mxu0 0
          %745 = vmatpush.bf16.msra.mxu0 0
          %746 = vmatpush.bf16.msra.mxu0 0
          %747 = vmatpush.bf16.msra.mxu0 %v735
          %748 = vmatpush.bf16.msra.mxu0 %v734
          %749 = vmatmul.bf16.gmra.mxu0 %v739
          %v750 = vpop.f32.mrf.mxu0
          %v751 = vadd.f32 %v724, %v750
          %v752 = vpop.f32.mrf.mxu0
          %753 = vdwg.mxu0
          %v754 = vpack.c.bf16 %v751, %v751
          %vm755 = vcmask 519168
          %756 = vst.msk [vmem:[#allocation2] sm:$0xf] %vm755, %v754
        $region108: #{tpu_custom_call.1} parent=87 // pred_fallthru
          _
        %v757 = vld [vmem:[%s666] sm:$0xff]
        %v758 = vld [vmem:[%s3] sm:$0x1]
        %v759 = vld [vmem:[%s4] sm:$0x1]
        %vm760 = vcmask 261120
        %v761 = vsel %vm760, %v757, 0.0
        %762 = vadd.xlane.f32.xlu0 %v761
        %v763 = vpop.xlane.xlu0 %762
        %v764 = vrcp.pop 32.0
        %v765 = vmul.f32 32.0, %v764
        %v766 = vsub.f32 1.0, %v765
        %v767 = vmul.f32 %v764, %v766
        %v768 = vadd.f32 %v764, %v767
        %vm769 = vweird.f32 %v764
        %v770 = vsel %vm769, %v764, %v768
        %v771 = vmul.f32 %v763, %v770
        %v772 = vsub.f32 %v757, %v771
        %v773 = vmul.f32 %v772, %v772
        %v774 = vsel %vm760, %v773, 0.0
        %775 = vadd.xlane.f32.xlu0 %v774
        %v776 = vpop.xlane.xlu0 %775
        %v777 = vmul.f32 %v776, %v770
        %v778 = vadd.f32 %v777, 1e-05
        %v779 = vrsqrt.pop %v778
        %v780 = vmul.f32 %v779, %v778
        %v781 = vmul.f32 %v780, %v779
        %v782 = vmul.f32 0.5, %v781
        %v783 = vsub.f32 1.5, %v782
        %v784 = vmul.f32 %v779, %v783
        %vm785 = vweird.f32 %v778
        %vm786 = vweird.f32 %v779
        %vm787 = vmor %vm785, %vm786
        %v788 = vsel %vm787, %v779, %v784
        %v789 = vmul.f32 %v772, %v788
        %v791 = vperm.slane %v758, 0
        %v793 = vmul.f32 %v789, %v791
        %v795 = vperm.slane %v759, 0
        %v797 = vadd.f32 %v793, %v795
        %v798 = vpack.c.bf16 %v797, %v797
        %v799 = vld [vmem:[%s5] sm:$0xf]
        %v800 = vld [vmem:[%s5 + $0x4] sm:$0xf]
        %v801 = vld [vmem:[%s5 + $0x8] sm:$0xf]
        %v802 = vld [vmem:[%s5 + $0xc] sm:$0xf]
        %v803 = vld [vmem:[%s6] sm:$0x1]
        %v805 = vperm.slane %v803, 0
        %v811 = vunpack.c.l.b16 %v799
        %v812 = vunpack.c.l.b16 %v800
        %v813 = vunpack.c.l.b16 %v801
        %v814 = vunpack.c.l.b16 %v802
        %v815 = vpack.c.b16 %v812, %v811
        %v816 = vpack.c.b16 %v814, %v813
        %v820 = vsel %vm760, %v798, 0
        %822 = vmatpush.bf16.msra.mxu0 0
        %823 = vmatpush.bf16.msra.mxu0 0
        %824 = vmatpush.bf16.msra.mxu0 0
        %825 = vmatpush.bf16.msra.mxu0 0
        %826 = vmatpush.bf16.msra.mxu0 0
        %827 = vmatpush.bf16.msra.mxu0 0
        %828 = vmatpush.bf16.msra.mxu0 %v816
        %829 = vmatpush.bf16.msra.mxu0 %v815
        %830 = vmatmul.bf16.gmra.mxu0 %v820
        %v831 = vpop.f32.mrf.mxu0
        %v832 = vadd.f32 %v805, %v831
        %v833 = vpop.f32.mrf.mxu0
        %834 = vdwg.mxu0
        %v835 = vpack.c.bf16 %v832, %v832
        %v836 = vld [vmem:[#allocation2] sm:$0xf]
        %v837 = vld [vmem:[%s583] sm:$0x1]
        %vm838 = vcmp.gt.f32.partialorder %v837, 0.0
        %v839 = vsel %vm838, 0.0, -1e+09
        %v841 = vperm.slane %v839, 0
        %vm843 = vcmask 64512
        %v845 = vsel %vm843, %v835, 0
        %v848 = vsel %vm843, %v836, 0
        %850 = vmatpush.bf16.xpose.msra.mxu0 0
        %851 = vmatpush.bf16.xpose.msra.mxu0 0
        %852 = vmatpush.bf16.xpose.msra.mxu0 0
        %853 = vmatpush.bf16.xpose.msra.mxu0 0
        %854 = vmatpush.bf16.xpose.msra.mxu0 0
        %855 = vmatpush.bf16.xpose.msra.mxu0 0
        %856 = vmatpush.bf16.xpose.msra.mxu0 0
        %857 = vmatpush.bf16.xpose.msra.mxu0 %v848
        %858 = vmatmul.bf16.gmra.mxu0 %v845
        %v859 = vpop.f32.mrf.mxu0
        %v860 = vadd.f32 %v841, %v859
        %v861 = vpop.f32.mrf.mxu0
        %862 = vdwg.mxu0
        %v863 = vsel %vm843, %v860, -inf
        %864 = vmax.xlane.f32.xlu0 %v863
        %v865 = vpop.xlane.xlu0 %864
        %v866 = vsub.f32 %v860, %v865
        %v867 = vmul.f32 %v866, 1.442695
        %v868 = vpow.pop %v867
        %v869 = vsel %vm843, %v868, 0.0
        %870 = vadd.xlane.f32.xlu0 %v869
        %v871 = vpop.xlane.xlu0 %870
        %v872 = vrcp.pop %v871
        %v873 = vmul.f32 %v868, %v872
        %v874 = vpack.c.bf16 %v873, %v873
        %v876 = vunpack.c.l.b16 %v836
        %v877 = vpack.c.b16 %v876, %v876
        %878 = vrot.lane.b32.xlu0 %v877, 96
        %v879 = vpop.permute.xlu0 %878
        %v881 = vsel %vm843, %v874, 0
        %vm883 = vcmask 1043456
        %v885 = vsel %vm883, %v879, 0
        %887 = vmatpush.bf16.msra.mxu0 0
        %888 = vmatpush.bf16.msra.mxu0 0
        %889 = vmatpush.bf16.msra.mxu0 0
        %890 = vmatpush.bf16.msra.mxu0 0
        %891 = vmatpush.bf16.msra.mxu0 0
        %892 = vmatpush.bf16.msra.mxu0 0
        %893 = vmatpush.bf16.msra.mxu0 0
        %894 = vmatpush.bf16.msra.mxu0 %v885
        %895 = vmatmul.bf16.gmra.mxu0 %v881
        %v896 = vpop.f32.mrf.mxu0
        %v897 = vadd.f32 0.0, %v896
        %v898 = vpop.f32.mrf.mxu0
        %899 = vdwg.mxu0
        %v901 = vunpack.c.l.b16 %v835
        %v902 = vpack.c.b16 %v901, %v901
        %903 = vrot.lane.b32.xlu0 %v902, 120
        %v904 = vpop.permute.xlu0 %903
        %905 = vrot.lane.b32.xlu0 %v877, 120
        %v906 = vpop.permute.xlu0 %905
        %v908 = vsel %vm843, %v904, 0
        %v911 = vsel %vm843, %v906, 0
        %913 = vmatpush.bf16.xpose.msra.mxu0 0
        %914 = vmatpush.bf16.xpose.msra.mxu0 0
        %915 = vmatpush.bf16.xpose.msra.mxu0 0
        %916 = vmatpush.bf16.xpose.msra.mxu0 0
        %917 = vmatpush.bf16.xpose.msra.mxu0 0
        %918 = vmatpush.bf16.xpose.msra.mxu0 0
        %919 = vmatpush.bf16.xpose.msra.mxu0 0
        %920 = vmatpush.bf16.xpose.msra.mxu0 %v911
        %921 = vmatmul.bf16.gmra.mxu0 %v908
        %v922 = vpop.f32.mrf.mxu0
        %v923 = vadd.f32 %v841, %v922
        %v924 = vpop.f32.mrf.mxu0
        %925 = vdwg.mxu0
        %v926 = vsel %vm843, %v923, -inf
        %927 = vmax.xlane.f32.xlu0 %v926
        %v928 = vpop.xlane.xlu0 %927
        %v929 = vsub.f32 %v923, %v928
        %v930 = vmul.f32 %v929, 1.442695
        %v931 = vpow.pop %v930
        %v932 = vsel %vm843, %v931, 0.0
        %933 = vadd.xlane.f32.xlu0 %v932
        %v934 = vpop.xlane.xlu0 %933
        %v935 = vrcp.pop %v934
        %v936 = vmul.f32 %v931, %v935
        %v937 = vpack.c.bf16 %v936, %v936
        %938 = vrot.lane.b32.xlu0 %v877, 88
        %v939 = vpop.permute.xlu0 %938
        %v941 = vsel %vm843, %v937, 0
        %v944 = vsel %vm883, %v939, 0
        %946 = vmatpush.bf16.msra.mxu0 0
        %947 = vmatpush.bf16.msra.mxu0 0
        %948 = vmatpush.bf16.msra.mxu0 0
        %949 = vmatpush.bf16.msra.mxu0 0
        %950 = vmatpush.bf16.msra.mxu0 0
        %951 = vmatpush.bf16.msra.mxu0 0
        %952 = vmatpush.bf16.msra.mxu0 0
        %953 = vmatpush.bf16.msra.mxu0 %v944
        %954 = vmatmul.bf16.gmra.mxu0 %v941
        %v955 = vpop.f32.mrf.mxu0
        %v956 = vadd.f32 0.0, %v955
        %v957 = vpop.f32.mrf.mxu0
        %958 = vdwg.mxu0
        %959 = vrot.lane.b32.xlu0 %v902, 112
        %v960 = vpop.permute.xlu0 %959
        %961 = vrot.lane.b32.xlu0 %v877, 112
        %v962 = vpop.permute.xlu0 %961
        %v964 = vsel %vm843, %v960, 0
        %v967 = vsel %vm843, %v962, 0
        %969 = vmatpush.bf16.xpose.msra.mxu0 0
        %970 = vmatpush.bf16.xpose.msra.mxu0 0
        %971 = vmatpush.bf16.xpose.msra.mxu0 0
        %972 = vmatpush.bf16.xpose.msra.mxu0 0
        %973 = vmatpush.bf16.xpose.msra.mxu0 0
        %974 = vmatpush.bf16.xpose.msra.mxu0 0
        %975 = vmatpush.bf16.xpose.msra.mxu0 0
        %976 = vmatpush.bf16.xpose.msra.mxu0 %v967
        %977 = vmatmul.bf16.gmra.mxu0 %v964
        %v978 = vpop.f32.mrf.mxu0
        %v979 = vadd.f32 %v841, %v978
        %v980 = vpop.f32.mrf.mxu0
        %981 = vdwg.mxu0
        %v982 = vsel %vm843, %v979, -inf
        %983 = vmax.xlane.f32.xlu0 %v982
        %v984 = vpop.xlane.xlu0 %983
        %v985 = vsub.f32 %v979, %v984
        %v986 = vmul.f32 %v985, 1.442695
        %v987 = vpow.pop %v986
        %v988 = vsel %vm843, %v987, 0.0
        %989 = vadd.xlane.f32.xlu0 %v988
        %v990 = vpop.xlane.xlu0 %989
        %v991 = vrcp.pop %v990
        %v992 = vmul.f32 %v987, %v991
        %v993 = vpack.c.bf16 %v992, %v992
        %994 = vrot.lane.b32.xlu0 %v877, 80
        %v995 = vpop.permute.xlu0 %994
        %v997 = vsel %vm843, %v993, 0
        %v1000 = vsel %vm883, %v995, 0
        %1002 = vmatpush.bf16.msra.mxu0 0
        %1003 = vmatpush.bf16.msra.mxu0 0
        %1004 = vmatpush.bf16.msra.mxu0 0
        %1005 = vmatpush.bf16.msra.mxu0 0
        %1006 = vmatpush.bf16.msra.mxu0 0
        %1007 = vmatpush.bf16.msra.mxu0 0
        %1008 = vmatpush.bf16.msra.mxu0 0
        %1009 = vmatpush.bf16.msra.mxu0 %v1000
        %1010 = vmatmul.bf16.gmra.mxu0 %v997
        %v1011 = vpop.f32.mrf.mxu0
        %v1012 = vadd.f32 0.0, %v1011
        %v1013 = vpop.f32.mrf.mxu0
        %1014 = vdwg.mxu0
        %1015 = vrot.lane.b32.xlu0 %v902, 104
        %v1016 = vpop.permute.xlu0 %1015
        %1017 = vrot.lane.b32.xlu0 %v877, 104
        %v1018 = vpop.permute.xlu0 %1017
        %v1020 = vsel %vm843, %v1016, 0
        %v1023 = vsel %vm843, %v1018, 0
        %1025 = vmatpush.bf16.xpose.msra.mxu0 0
        %1026 = vmatpush.bf16.xpose.msra.mxu0 0
        %1027 = vmatpush.bf16.xpose.msra.mxu0 0
        %1028 = vmatpush.bf16.xpose.msra.mxu0 0
        %1029 = vmatpush.bf16.xpose.msra.mxu0 0
        %1030 = vmatpush.bf16.xpose.msra.mxu0 0
        %1031 = vmatpush.bf16.xpose.msra.mxu0 0
        %1032 = vmatpush.bf16.xpose.msra.mxu0 %v1023
        %1033 = vmatmul.bf16.gmra.mxu0 %v1020
        %v1034 = vpop.f32.mrf.mxu0
        %v1035 = vadd.f32 %v841, %v1034
        %v1036 = vpop.f32.mrf.mxu0
        %1037 = vdwg.mxu0
        %v1038 = vsel %vm843, %v1035, -inf
        %1039 = vmax.xlane.f32.xlu0 %v1038
        %v1040 = vpop.xlane.xlu0 %1039
        %v1041 = vsub.f32 %v1035, %v1040
        %v1042 = vmul.f32 %v1041, 1.442695
        %v1043 = vpow.pop %v1042
        %v1044 = vsel %vm843, %v1043, 0.0
        %1045 = vadd.xlane.f32.xlu0 %v1044
        %v1046 = vpop.xlane.xlu0 %1045
        %v1047 = vrcp.pop %v1046
        %v1048 = vmul.f32 %v1043, %v1047
        %v1049 = vpack.c.bf16 %v1048, %v1048
        %1050 = vrot.lane.b32.xlu0 %v877, 72
        %v1051 = vpop.permute.xlu0 %1050
        %v1053 = vsel %vm843, %v1049, 0
        %v1056 = vsel %vm883, %v1051, 0
        %1058 = vmatpush.bf16.msra.mxu0 0
        %1059 = vmatpush.bf16.msra.mxu0 0
        %1060 = vmatpush.bf16.msra.mxu0 0
        %1061 = vmatpush.bf16.msra.mxu0 0
        %1062 = vmatpush.bf16.msra.mxu0 0
        %1063 = vmatpush.bf16.msra.mxu0 0
        %1064 = vmatpush.bf16.msra.mxu0 0
        %1065 = vmatpush.bf16.msra.mxu0 %v1056
        %1066 = vmatmul.bf16.gmra.mxu0 %v1053
        %v1067 = vpop.f32.mrf.mxu0
        %v1068 = vadd.f32 0.0, %v1067
        %v1069 = vpop.f32.mrf.mxu0
        %1070 = vdwg.mxu0
        %1072 = vrot.lane.b32.xlu0 %v956, 8
        %v1073 = vpop.permute.xlu0 %1072
        %1076 = vrot.lane.b32.xlu0 %v1012, 16
        %v1077 = vpop.permute.xlu0 %1076
        %1080 = vrot.lane.b32.xlu0 %v1068, 24
        %v1081 = vpop.permute.xlu0 %1080
        %v1083 = vsel %vm843, %v897, %v1073
        %vm1084 = vcmask 130048
        %v1085 = vsel %vm1084, %v1083, %v1077
        %vm1086 = vcmask 195584
        %v1087 = vsel %vm1086, %v1085, %v1081
        %v1088 = vpack.c.bf16 %v1087, %v1087
        %v1089 = vld [vmem:[#allocation8] sm:$0xf]
        %v1090 = vld [vmem:[#allocation8 + $0x4] sm:$0xf]
        %v1091 = vld [vmem:[#allocation8 + $0x8] sm:$0xf]
        %v1092 = vld [vmem:[#allocation8 + $0xc] sm:$0xf]
        %v1093 = vld [vmem:[%s10] sm:$0x1]
        %v1095 = vperm.slane %v1093, 0
        %v1101 = vunpack.c.l.b16 %v1089
        %v1102 = vunpack.c.l.b16 %v1090
        %v1103 = vunpack.c.l.b16 %v1091
        %v1104 = vunpack.c.l.b16 %v1092
        %v1105 = vpack.c.b16 %v1102, %v1101
        %v1106 = vpack.c.b16 %v1104, %v1103
        %v1110 = vsel %vm760, %v1088, 0
        %1112 = vmatpush.bf16.msra.mxu0 0
        %1113 = vmatpush.bf16.msra.mxu0 0
        %1114 = vmatpush.bf16.msra.mxu0 0
        %1115 = vmatpush.bf16.msra.mxu0 0
        %1116 = vmatpush.bf16.msra.mxu0 0
        %1117 = vmatpush.bf16.msra.mxu0 0
        %1118 = vmatpush.bf16.msra.mxu0 %v1106
        %1119 = vmatpush.bf16.msra.mxu0 %v1105
        %1120 = vmatmul.bf16.gmra.mxu0 %v1110
        %v1121 = vpop.f32.mrf.mxu0
        %v1122 = vadd.f32 %v1095, %v1121
        %v1123 = vpop.f32.mrf.mxu0
        %1124 = vdwg.mxu0
        %v1125 = vadd.f32 %v757, %v1122
        %v1126 = vld [vmem:[%s11] sm:$0x1]
        %v1127 = vld [vmem:[%s12] sm:$0x1]
        %v1128 = vsel %vm760, %v1125, 0.0
        %1129 = vadd.xlane.f32.xlu0 %v1128
        %v1130 = vpop.xlane.xlu0 %1129
        %v1131 = vmul.f32 %v1130, %v770
        %v1132 = vsub.f32 %v1125, %v1131
        %v1133 = vmul.f32 %v1132, %v1132
        %v1134 = vsel %vm760, %v1133, 0.0
        %1135 = vadd.xlane.f32.xlu0 %v1134
        %v1136 = vpop.xlane.xlu0 %1135
        %v1137 = vmul.f32 %v1136, %v770
        %v1138 = vadd.f32 %v1137, 1e-05
        %v1139 = vrsqrt.pop %v1138
        %v1140 = vmul.f32 %v1139, %v1138
        %v1141 = vmul.f32 %v1140, %v1139
        %v1142 = vmul.f32 0.5, %v1141
        %v1143 = vsub.f32 1.5, %v1142
        %v1144 = vmul.f32 %v1139, %v1143
        %vm1145 = vweird.f32 %v1138
        %vm1146 = vweird.f32 %v1139
        %vm1147 = vmor %vm1145, %vm1146
        %v1148 = vsel %vm1147, %v1139, %v1144
        %v1149 = vmul.f32 %v1132, %v1148
        %v1151 = vperm.slane %v1126, 0
        %v1153 = vmul.f32 %v1149, %v1151
        %v1155 = vperm.slane %v1127, 0
        %v1157 = vadd.f32 %v1153, %v1155
        %v1158 = vpack.c.bf16 %v1157, %v1157
        %v1159 = vld [vmem:[#allocation9] sm:$0xf]
        %v1160 = vld [vmem:[#allocation9 + $0x4] sm:$0xf]
        %v1161 = vld [vmem:[#allocation9 + $0x8] sm:$0xf]
        %v1162 = vld [vmem:[#allocation9 + $0xc] sm:$0xf]
        %v1163 = vld [vmem:[%s14] sm:$0x1]
        %v1165 = vperm.slane %v1163, 0
        %v1171 = vunpack.c.l.b16 %v1159
        %v1172 = vunpack.c.l.b16 %v1160
        %v1173 = vunpack.c.l.b16 %v1161
        %v1174 = vunpack.c.l.b16 %v1162
        %v1175 = vpack.c.b16 %v1172, %v1171
        %v1176 = vpack.c.b16 %v1174, %v1173
        %v1180 = vsel %vm760, %v1158, 0
        %1182 = vmatpush.bf16.msra.mxu0 0
        %1183 = vmatpush.bf16.msra.mxu0 0
        %1184 = vmatpush.bf16.msra.mxu0 0
        %1185 = vmatpush.bf16.msra.mxu0 0
        %1186 = vmatpush.bf16.msra.mxu0 0
        %1187 = vmatpush.bf16.msra.mxu0 0
        %1188 = vmatpush.bf16.msra.mxu0 %v1176
        %1189 = vmatpush.bf16.msra.mxu0 %v1175
        %1190 = vmatmul.bf16.gmra.mxu0 %v1180
        %v1191 = vpop.f32.mrf.mxu0
        %v1192 = vadd.f32 %v1165, %v1191
        %v1193 = vpop.f32.mrf.mxu0
        %1194 = vdwg.mxu0
        %v1195 = vmax.f32 %v1192, 0.0
        %v1196 = vpack.c.bf16 %v1195, %v1195
        %v1197 = vld [vmem:[%s15] sm:$0xf]
        %v1198 = vld [vmem:[%s15 + $0x4] sm:$0xf]
        %v1199 = vld [vmem:[%s15 + $0x8] sm:$0xf]
        %v1200 = vld [vmem:[%s15 + $0xc] sm:$0xf]
        %v1201 = vld [vmem:[%s15 + $0x10] sm:$0xf]
        %v1202 = vld [vmem:[%s15 + $0x14] sm:$0xf]
        %v1203 = vld [vmem:[%s15 + $0x18] sm:$0xf]
        %v1204 = vld [vmem:[%s15 + $0x1c] sm:$0xf]
        %v1205 = vld [vmem:[%s16] sm:$0x1]
        %v1207 = vperm.slane %v1205, 0
        %v1217 = vunpack.c.l.b16 %v1197
        %v1218 = vunpack.c.l.b16 %v1198
        %v1219 = vunpack.c.l.b16 %v1199
        %v1220 = vunpack.c.l.b16 %v1200
        %v1221 = vunpack.c.l.b16 %v1201
        %v1222 = vunpack.c.l.b16 %v1202
        %v1223 = vunpack.c.l.b16 %v1203
        %v1224 = vunpack.c.l.b16 %v1204
        %v1225 = vpack.c.b16 %v1218, %v1217
        %v1226 = vpack.c.b16 %v1220, %v1219
        %v1227 = vpack.c.b16 %v1222, %v1221
        %v1228 = vpack.c.b16 %v1224, %v1223
        %vm1233 = vcmask 523264
        %v1235 = vsel %vm1233, %v1196, 0
        %1237 = vmatpush.bf16.msra.mxu0 0
        %1238 = vmatpush.bf16.msra.mxu0 0
        %1239 = vmatpush.bf16.msra.mxu0 0
        %1240 = vmatpush.bf16.msra.mxu0 0
        %1241 = vmatpush.bf16.msra.mxu0 %v1228
        %1242 = vmatpush.bf16.msra.mxu0 %v1227
        %1243 = vmatpush.bf16.msra.mxu0 %v1226
        %1244 = vmatpush.bf16.msra.mxu0 %v1225
        %1245 = vmatmul.bf16.gmra.mxu0 %v1235
        %v1246 = vpop.f32.mrf.mxu0
        %v1247 = vadd.f32 %v1207, %v1246
        %v1248 = vpop.f32.mrf.mxu0
        %1249 = vdwg.mxu0
        %v1250 = vadd.f32 %v1125, %v1247
        %1251 = vst.msk [vmem:[%s659] sm:$0xff] %vm760, %v1250
        %s1252 = sand.u32 %s432, 1
        %s1253 = scalar_lea.sflag [#allocation5], %s1252
        %s1254 = sand.u32 %s432, 1
        %s1255 = smul.addr %s1254, 8
        %s1256 = scalar_lea.vmem [#allocation11], %s1255
        // Predicated region
        $region109: #{tpu_custom_call.1} parent=87 // pred_check
          %p1257 = pneg %p442
        $region110: #{tpu_custom_call.1} parent=87 // pred_check_branch
          %1259 = sbr.rel (%p1257) target = $region112
        $region111: #{tpu_custom_call.1} parent=87 // pred_region
          %1261 = vsyncadd %s1253, 0
          %s1262 = sadd.s32 %s41, %s40
          %s1263 = smul.addr %s1262, 8
          %s1264 = scalar_lea.hbm %s17, %s1263
          %s1266 = sshll.u32 %s1256, 4
          %s1267 = int_to_ptr.vmem [resolvable:$true] %s1266
          %s1268 = sshll.u32 %s1264, 4
          %s1269 = int_to_ptr.hbm [resolvable:$true] %s1268
          %1271 = dma.vmem_to_hbm [thread:$0]  %s1267, 128, %s1269, %s1253
        $region112: #{tpu_custom_call.1} parent=87 // pred_fallthru
          _
      $region88: #{tpu_custom_call.1} parent=5 // pred_fallthru
        _
      %p1272 = scmp.le.s32.totalorder 2, %s31
      // Predicated region
      $region113: #{tpu_custom_call.1} parent=5 // pred_check
        %p1273 = pneg %p1272
      $region114: #{tpu_custom_call.1} parent=5 // pred_check_branch
        %1275 = sbr.rel (%p1273) target = $region116
      $region115: #{tpu_custom_call.1} parent=5 // pred_region
        %s1276 = ssub.s32 %s31, 2
        // Predicated region
        $region117: #{tpu_custom_call.1} parent=115 // pred_check
          %p1277 = pneg %p448
        $region118: #{tpu_custom_call.1} parent=115 // pred_check_branch
          %1279 = sbr.rel (%p1277) target = $region120
        $region119: #{tpu_custom_call.1} parent=115 // pred_region
          %s1280 = sand.u32 %s433, 1
          %s1281 = scalar_lea.sflag [#allocation5], %s1280
          %s1282 = sand.u32 %s433, 1
          %s1283 = smul.addr %s1282, 8
          %s1284 = scalar_lea.vmem [#allocation11], %s1283
          %1286 = dma.done %s1281, 128
        $region120: #{tpu_custom_call.1} parent=115 // pred_fallthru
          _
      $region116: #{tpu_custom_call.1} parent=5 // pred_fallthru
        _
    $region6: #{tpu_custom_call.1} parent=1 // loop_footer
      %s35 = sadd.s32 1, %s31
    $region7: #{tpu_custom_call.1} parent=1 // loop_footer_branch
      %30 = sbr.rel target = $region3
    $region8: #{tpu_custom_call.1} parent=1 // loop_exit
      _
    %1287 = vsyncpa [#allocation4], 1
    %s1288 = scalar_lea.sflag [#allocation4], 1
    %1289 = vsyncpa %s1288, 1
    %1290 = vsyncpa [#allocation7], 1
    %1291 = vsyncpa [#allocation10], 1
    %1292 = vsyncpa [#allocation5], 1
    %s1293 = scalar_lea.sflag [#allocation5], 1
    %1294 = vsyncpa %s1293, 1

</llo_original>
